<compile_context>
chip_gen: v7x
topology: tpu7x:2x2x1
jax: 0.10.0
libtpu: 0.0.40
codegen_flags: <defaults>
</compile_context>

<pallas_src>
import functools
import math

import jax
import jax.numpy as jnp
from jax.experimental import pallas as pl
from jax.experimental.pallas import tpu as pltpu


def _layernorm(v, gamma, beta, eps=1e-5):
    mu = jnp.mean(v, axis=-1, keepdims=True)
    var = jnp.mean((v - mu) ** 2, axis=-1, keepdims=True)
    return (v - mu) * jax.lax.rsqrt(var + eps) * gamma + beta


def _pick_seq_tile(S, target=128):
    """Largest multiple-of-8 divisor of S that is <= target; falls back to S (full dim is always legal)."""
    best = S
    for t in range(8, min(S, target) + 1, 8):
        if S % t == 0:
            best = t
    return best


# ----------------------------- kernel 1: pre-norm + fused QKV projection -----------------------------
def _qkv_kernel(x_ref, wqkv_ref, bqkv_ref, g_in_ref, b_in_ref, qkv_ref):
    x = x_ref[0].astype(jnp.float32)                              # (tile, E)
    n = _layernorm(x, g_in_ref[...], b_in_ref[...])               # norm_input, f32
    qkv = jnp.dot(n.astype(jnp.bfloat16), wqkv_ref[...],          # bf16 x bf16 -> f32 accumulate
                  preferred_element_type=jnp.float32) + bqkv_ref[...]
    qkv_ref[0] = qkv.astype(qkv_ref.dtype)                        # store bf16


# --------------------- kernel 2: attention (all heads batched) + out proj + FFN ----------------------
def _attn_ffn_kernel(x_ref, bias_ref, q_ref, k_ref, v_ref,
                     wo_ref, bo_ref, g_out_ref, b_out_ref, g_ff_ref, b_ff_ref,
                     w1_ref, b1_ref, w2_ref, b2_ref, o_ref):
    f32, bf16 = jnp.float32, jnp.bfloat16

    x = x_ref[0].astype(f32)        # (tq, E) residual input
    q = q_ref[0]                    # (H, tq, dk) bf16, 1/sqrt(dk) already folded in
    k = k_ref[0]                    # (H, S,  dk) bf16
    v = v_ref[0]                    # (H, S,  dk) bf16

    # scores for all heads at once; masking is a single precomputed additive bias
    s = jnp.einsum("hqd,hkd->hqk", q, k, preferred_element_type=f32)      # (H, tq, S)
    s = s + bias_ref[0].astype(f32)[None, :, :]
    p = jax.nn.softmax(s, axis=-1)                                        # f32 softmax per head

    ctx = jnp.einsum("hqk,hkd->hqd", p.astype(bf16), v,
                     preferred_element_type=f32)                          # (H, tq, dk)

    # output projection with Wo pre-split per head: concat_h(ctx_h) @ Wo == sum_h ctx_h @ Wo_h
    per_head = jnp.einsum("hqd,hde->hqe", ctx.astype(bf16), wo_ref[...],
                          preferred_element_type=f32)                     # (H, tq, E)
    attn = jnp.sum(per_head, axis=0) + bo_ref[...]                        # (tq, E)

    x1 = _layernorm(x + attn, g_out_ref[...], b_out_ref[...])             # norm_output

    h1 = jnp.dot(x1.astype(bf16), w1_ref[...], preferred_element_type=f32) + b1_ref[...]
    h1 = jnp.maximum(h1, 0.0)                                             # ReLU in f32
    ff = jnp.dot(h1.astype(bf16), w2_ref[...], preferred_element_type=f32) + b2_ref[...]

    o_ref[0] = _layernorm(x1 + ff, g_ff_ref[...], b_ff_ref[...]).astype(o_ref.dtype)


# ---------------------------------------------- wrapper ----------------------------------------------
def encoder_layer(x, mask, params, *, num_heads, seq_tile=128):
    B, S, E = x.shape
    F = params["w1"].shape[1]
    assert E % num_heads == 0
    d_k = E // num_heads
    scale = 1.0 / math.sqrt(d_k)
    bf16, f32 = jnp.bfloat16, jnp.float32

    tile = _pick_seq_tile(S, seq_tile)
    grid = (B, S // tile)
    cparams = pltpu.CompilerParams(
        dimension_semantics=("parallel", "parallel"),
        vmem_limit_bytes=64 * 1024 * 1024)

    # fold 1/sqrt(d_k) into Wq/bq, fuse QKV, cast MXU weights to bf16
    wqkv = jnp.concatenate([params["wq"] * scale, params["wk"], params["wv"]], axis=1).astype(bf16)
    bqkv = jnp.concatenate([params["bq"] * scale, params["bk"], params["bv"]], axis=1).astype(f32)

    const2d = lambda shp: pl.BlockSpec(shp, lambda b, i: (0, 0))

    qkv = pl.pallas_call(
        _qkv_kernel,
        out_shape=jax.ShapeDtypeStruct((B, S, 3 * E), bf16),
        grid_spec=pltpu.PrefetchScalarGridSpec(
            num_scalar_prefetch=0,
            grid=grid,
            in_specs=[
                pl.BlockSpec((1, tile, E), lambda b, i: (b, i, 0)),   # x tile
                const2d((E, 3 * E)),                                  # fused Wqkv (bf16)
                const2d((1, 3 * E)),                                  # fused bias (f32)
                const2d((1, E)), const2d((1, E)),                     # norm_input gamma/beta
            ],
            out_specs=pl.BlockSpec((1, tile, 3 * E), lambda b, i: (b, i, 0)),
        ),
        compiler_params=cparams,
    )(x, wqkv, bqkv, params["g_in"], params["b_in"])

    # wrapper-side layout plumbing (plain XLA): split heads -> (B, H, S, d_k), keep bf16
    q, k, v = jnp.split(qkv, 3, axis=-1)

    def to_heads(t):
        return t.reshape(B, S, num_heads, d_k).transpose(0, 2, 1, 3)

    q_h, k_h, v_h = to_heads(q), to_heads(k), to_heads(v)

    # masked_fill(mask == 0, -1e9) as an additive bias; bf16 halves its DMA traffic
    attn_bias = jnp.where(mask == 0.0, -1e9, 0.0).astype(bf16)            # (B, S, S)
    wo_heads = params["wo"].reshape(num_heads, d_k, E).astype(bf16)       # (H, dk, E)

    out = pl.pallas_call(
        _attn_ffn_kernel,
        out_shape=jax.ShapeDtypeStruct((B, S, E), x.dtype),
        grid_spec=pltpu.PrefetchScalarGridSpec(
            num_scalar_prefetch=0,
            grid=grid,
            in_specs=[
                pl.BlockSpec((1, tile, E), lambda b, i: (b, i, 0)),                 # x tile (residual)
                pl.BlockSpec((1, tile, S), lambda b, i: (b, i, 0)),                 # additive mask bias
                pl.BlockSpec((1, num_heads, tile, d_k), lambda b, i: (b, 0, i, 0)),  # q tile
                pl.BlockSpec((1, num_heads, S, d_k), lambda b, i: (b, 0, 0, 0)),     # k (full seq)
                pl.BlockSpec((1, num_heads, S, d_k), lambda b, i: (b, 0, 0, 0)),     # v (full seq)
                pl.BlockSpec((num_heads, d_k, E), lambda b, i: (0, 0, 0)),          # Wo per head
                const2d((1, E)),                                                    # bo
                const2d((1, E)), const2d((1, E)),                                   # norm_output
                const2d((1, E)), const2d((1, E)),                                   # norm_feedforward
                const2d((E, F)), const2d((1, F)),                                   # fc1
                const2d((F, E)), const2d((1, E)),                                   # fc2
            ],
            out_specs=pl.BlockSpec((1, tile, E), lambda b, i: (b, i, 0)),
        ),
        compiler_params=cparams,
    )(x, attn_bias, q_h, k_h, v_h, wo_heads, params["bo"],
      params["g_out"], params["b_out"], params["g_ff"], params["b_ff"],
      params["w1"].astype(bf16), params["b1"], params["w2"].astype(bf16), params["b2"])
    return out


# --------------------------------------- pure-JAX reference ------------------------------------------
def _mm(a, b):
    """bf16 MXU matmul with f32 accumulation — same precision recipe as the kernels."""
    return jnp.dot(a.astype(jnp.bfloat16), b.astype(jnp.bfloat16),
                   preferred_element_type=jnp.float32)


def _reference(x, mask, p, num_heads):
    B, S, E = x.shape
    d_k = E // num_heads
    scale = 1.0 / math.sqrt(d_k)
    f32, bf16 = jnp.float32, jnp.bfloat16

    n = _layernorm(x.astype(f32), p["g_in"], p["b_in"])
    q = (_mm(n, p["wq"] * scale) + p["bq"] * scale).astype(bf16)
    k = (_mm(n, p["wk"]) + p["bk"]).astype(bf16)
    v = (_mm(n, p["wv"]) + p["bv"]).astype(bf16)

    def to_heads(t):
        return t.reshape(B, S, num_heads, d_k).transpose(0, 2, 1, 3)

    qh, kh, vh = to_heads(q), to_heads(k), to_heads(v)

    bias = jnp.where(mask == 0.0, -1e9, 0.0).astype(bf16).astype(f32)
    s = jnp.einsum("bhqd,bhkd->bhqk", qh, kh, preferred_element_type=f32)
    s = s + bias[:, None, :, :]
    probs = jax.nn.softmax(s, axis=-1)
    ctx = jnp.einsum("bhqk,bhkd->bhqd", probs.astype(bf16), vh, preferred_element_type=f32)
    ctx = ctx.transpose(0, 2, 1, 3).reshape(B, S, E)
    attn = _mm(ctx, p["wo"]) + p["bo"]
    x1 = _layernorm(x + attn, p["g_out"], p["b_out"])
    h1 = jnp.maximum(_mm(x1, p["w1"]) + p["b1"], 0.0)
    ff = _mm(h1, p["w2"]) + p["b2"]
    return _layernorm(x1 + ff, p["g_ff"], p["b_ff"])


if __name__ == "__main__":
    B, S, E, H, F = 2, 8, 32, 4, 64

    key = jax.random.PRNGKey(0)
    keys = jax.random.split(key, 16)
    w_scale = 1.0 / math.sqrt(E)

    params = {
        "wq": jax.random.normal(keys[0], (E, E), jnp.float32) * w_scale,
        "bq": jax.random.normal(keys[1], (1, E), jnp.float32) * 0.01,
        "wk": jax.random.normal(keys[2], (E, E), jnp.float32) * w_scale,
        "bk": jax.random.normal(keys[3], (1, E), jnp.float32) * 0.01,
        "wv": jax.random.normal(keys[4], (E, E), jnp.float32) * w_scale,
        "bv": jax.random.normal(keys[5], (1, E), jnp.float32) * 0.01,
        "wo": jax.random.normal(keys[6], (E, E), jnp.float32) * w_scale,
        "bo": jax.random.normal(keys[7], (1, E), jnp.float32) * 0.01,
        "g_in": jnp.ones((1, E), jnp.float32),
        "b_in": jnp.zeros((1, E), jnp.float32),
        "g_out": jnp.ones((1, E), jnp.float32),
        "b_out": jnp.zeros((1, E), jnp.float32),
        "g_ff": jnp.ones((1, E), jnp.float32),
        "b_ff": jnp.zeros((1, E), jnp.float32),
        "w1": jax.random.normal(keys[8], (E, F), jnp.float32) * w_scale,
        "b1": jax.random.normal(keys[9], (1, F), jnp.float32) * 0.01,
        "w2": jax.random.normal(keys[10], (F, E), jnp.float32) * (1.0 / math.sqrt(F)),
        "b2": jax.random.normal(keys[11], (1, E), jnp.float32) * 0.01,
    }

    x = jax.random.normal(keys[12], (B, S, E), jnp.float32)
    mask = (jax.random.uniform(keys[13], (B, S, S)) > 0.2).astype(jnp.float32)

    run = jax.jit(functools.partial(encoder_layer, num_heads=H))
    out = jax.block_until_ready(run(x, mask, params))

    ref = _reference(x, mask, params, H)
    assert out.shape == (B, S, E)
    assert jnp.allclose(out, ref, atol=5e-3, rtol=5e-3), (
        f"mismatch vs reference: max|diff|={jnp.max(jnp.abs(out - ref))}")

    print("KERNEL_OK")
</pallas_src>

<mosaic_0001>
module attributes {stable_mosaic.version = 11 : i64} {
  func.func @_qkv_kernel(%arg0: i32, %arg1: i32, %arg2: memref<1x8x32xf32, #tpu.memory_space<vmem>>, %arg3: memref<32x96xbf16, #tpu.memory_space<vmem>>, %arg4: memref<1x96xf32, #tpu.memory_space<vmem>>, %arg5: memref<1x32xf32, #tpu.memory_space<vmem>>, %arg6: memref<1x32xf32, #tpu.memory_space<vmem>>, %arg7: memref<1x8x96xbf16, #tpu.memory_space<vmem>>) attributes {dimension_semantics = [#tpu.dimension_semantics<parallel>, #tpu.dimension_semantics<parallel>], iteration_bounds = array<i64: 2, 1>, scalar_prefetch = 0 : i64, scratch_operands = 0 : i64, tpu.core_type = #tpu.core_type<tc>, window_params = [{transform_indices = @transform_0, window_bounds = array<i64: 1, 8, 32>}, {pipeline_mode = #tpu.pipeline_mode<synchronous>, transform_indices = @transform_1, window_bounds = array<i64: 32, 96>}, {pipeline_mode = #tpu.pipeline_mode<synchronous>, transform_indices = @transform_2, window_bounds = array<i64: 1, 96>}, {pipeline_mode = #tpu.pipeline_mode<synchronous>, transform_indices = @transform_3, window_bounds = array<i64: 1, 32>}, {pipeline_mode = #tpu.pipeline_mode<synchronous>, transform_indices = @transform_4, window_bounds = array<i64: 1, 32>}, {transform_indices = @transform_5, window_bounds = array<i64: 1, 8, 96>}]} {
    %c0 = arith.constant 0 : index
    %c0_0 = arith.constant 0 : index
    %c0_1 = arith.constant 0 : index
    %0 = vector.load %arg2[%c0, %c0_0, %c0_1] : memref<1x8x32xf32, #tpu.memory_space<vmem>>, vector<1x8x32xf32>
    %1 = vector.shape_cast %0 : vector<1x8x32xf32> to vector<8x32xf32>
    %c0_2 = arith.constant 0 : index
    %c0_3 = arith.constant 0 : index
    %2 = vector.load %arg5[%c0_2, %c0_3] : memref<1x32xf32, #tpu.memory_space<vmem>>, vector<1x32xf32>
    %c0_4 = arith.constant 0 : index
    %c0_5 = arith.constant 0 : index
    %3 = vector.load %arg6[%c0_4, %c0_5] : memref<1x32xf32, #tpu.memory_space<vmem>>, vector<1x32xf32>
    %cst = arith.constant dense<0.000000e+00> : vector<8xf32>
    %4 = vector.multi_reduction <add>, %1, %cst [1] : vector<8x32xf32> to vector<8xf32>
    %5 = vector.shape_cast %4 : vector<8xf32> to vector<8x1xf32>
    %cst_6 = arith.constant 3.200000e+01 : f32
    %6 = vector.broadcast %cst_6 : f32 to vector<8x1xf32>
    %7 = arith.divf %5, %6 : vector<8x1xf32>
    %8 = vector.broadcast %7 : vector<8x1xf32> to vector<8x32xf32>
    %9 = arith.subf %1, %8 : vector<8x32xf32>
    %10 = arith.mulf %9, %9 : vector<8x32xf32>
    %cst_7 = arith.constant dense<0.000000e+00> : vector<8xf32>
    %11 = vector.multi_reduction <add>, %10, %cst_7 [1] : vector<8x32xf32> to vector<8xf32>
    %12 = vector.shape_cast %11 : vector<8xf32> to vector<8x1xf32>
    %cst_8 = arith.constant 3.200000e+01 : f32
    %13 = vector.broadcast %cst_8 : f32 to vector<8x1xf32>
    %14 = arith.divf %12, %13 : vector<8x1xf32>
    %15 = vector.broadcast %7 : vector<8x1xf32> to vector<8x32xf32>
    %16 = arith.subf %1, %15 : vector<8x32xf32>
    %cst_9 = arith.constant 9.99999974E-6 : f32
    %17 = vector.broadcast %cst_9 : f32 to vector<8x1xf32>
    %18 = arith.addf %14, %17 : vector<8x1xf32>
    %19 = math.rsqrt %18 : vector<8x1xf32>
    %20 = vector.broadcast %19 : vector<8x1xf32> to vector<8x32xf32>
    %21 = arith.mulf %16, %20 : vector<8x32xf32>
    %22 = vector.broadcast %2 : vector<1x32xf32> to vector<8x32xf32>
    %23 = arith.mulf %21, %22 : vector<8x32xf32>
    %24 = vector.broadcast %3 : vector<1x32xf32> to vector<8x32xf32>
    %25 = arith.addf %23, %24 : vector<8x32xf32>
    %26 = arith.truncf %25 : vector<8x32xf32> to vector<8x32xbf16>
    %c0_10 = arith.constant 0 : index
    %c0_11 = arith.constant 0 : index
    %27 = vector.load %arg3[%c0_10, %c0_11] : memref<32x96xbf16, #tpu.memory_space<vmem>>, vector<32x96xbf16>
    %cst_12 = arith.constant dense<0.000000e+00> : vector<8x96xf32>
    %28 = tpu.matmul %26, %27, %cst_12 {dimension_numbers = #tpu.dot_dimension_numbers<[1], [0], [0], [1], [0, 0, 1, 1], [], []>} : vector<8x32xbf16>, vector<32x96xbf16>, vector<8x96xf32> -> vector<8x96xf32>
    %c0_13 = arith.constant 0 : index
    %c0_14 = arith.constant 0 : index
    %29 = vector.load %arg4[%c0_13, %c0_14] : memref<1x96xf32, #tpu.memory_space<vmem>>, vector<1x96xf32>
    %30 = vector.broadcast %29 : vector<1x96xf32> to vector<8x96xf32>
    %31 = arith.addf %28, %30 : vector<8x96xf32>
    %32 = arith.truncf %31 : vector<8x96xf32> to vector<8x96xbf16>
    %c0_15 = arith.constant 0 : index
    %c0_16 = arith.constant 0 : index
    %c0_17 = arith.constant 0 : index
    %33 = vector.load %arg7[%c0_15, %c0_16, %c0_17] : memref<1x8x96xbf16, #tpu.memory_space<vmem>>, vector<1x8x96xbf16>
    %34 = vector.shape_cast %33 : vector<1x8x96xbf16> to vector<8x96xbf16>
    %35 = vector.shape_cast %32 : vector<8x96xbf16> to vector<1x8x96xbf16>
    tpu.vector_store %arg7[%c0_15, %c0_16, %c0_17], %35 {strides = array<i32>} : memref<1x8x96xbf16, #tpu.memory_space<vmem>>, vector<1x8x96xbf16>,
    return
  }
  func.func @transform_0(%arg0: i32, %arg1: i32) -> (i32, i32, i32) {
    %c0_i32 = arith.constant 0 : i32
    %c0_i32_0 = arith.constant 0 : i32
    return %arg0, %arg1, %c0_i32 : i32, i32, i32
  }
  func.func @transform_1(%arg0: i32, %arg1: i32) -> (i32, i32) {
    %c0_i32 = arith.constant 0 : i32
    %c0_i32_0 = arith.constant 0 : i32
    %c0_i32_1 = arith.constant 0 : i32
    return %c0_i32, %c0_i32_0 : i32, i32
  }
  func.func @transform_2(%arg0: i32, %arg1: i32) -> (i32, i32) {
    %c0_i32 = arith.constant 0 : i32
    %c0_i32_0 = arith.constant 0 : i32
    %c0_i32_1 = arith.constant 0 : i32
    return %c0_i32, %c0_i32_0 : i32, i32
  }
  func.func @transform_3(%arg0: i32, %arg1: i32) -> (i32, i32) {
    %c0_i32 = arith.constant 0 : i32
    %c0_i32_0 = arith.constant 0 : i32
    %c0_i32_1 = arith.constant 0 : i32
    return %c0_i32, %c0_i32_0 : i32, i32
  }
  func.func @transform_4(%arg0: i32, %arg1: i32) -> (i32, i32) {
    %c0_i32 = arith.constant 0 : i32
    %c0_i32_0 = arith.constant 0 : i32
    %c0_i32_1 = arith.constant 0 : i32
    return %c0_i32, %c0_i32_0 : i32, i32
  }
  func.func @transform_5(%arg0: i32, %arg1: i32) -> (i32, i32, i32) {
    %c0_i32 = arith.constant 0 : i32
    %c0_i32_0 = arith.constant 0 : i32
    return %arg0, %arg1, %c0_i32 : i32, i32, i32
  }
}

module attributes {stable_mosaic.version = 11 : i64} {
  func.func @_attn_ffn_kernel(%arg0: i32, %arg1: i32, %arg2: memref<1x8x32xf32, #tpu.memory_space<vmem>>, %arg3: memref<1x8x8xbf16, #tpu.memory_space<vmem>>, %arg4: memref<1x4x8x8xbf16, #tpu.memory_space<vmem>>, %arg5: memref<1x4x8x8xbf16, #tpu.memory_space<vmem>>, %arg6: memref<1x4x8x8xbf16, #tpu.memory_space<vmem>>, %arg7: memref<4x8x32xbf16, #tpu.memory_space<vmem>>, %arg8: memref<1x32xf32, #tpu.memory_space<vmem>>, %arg9: memref<1x32xf32, #tpu.memory_space<vmem>>, %arg10: memref<1x32xf32, #tpu.memory_space<vmem>>, %arg11: memref<1x32xf32, #tpu.memory_space<vmem>>, %arg12: memref<1x32xf32, #tpu.memory_space<vmem>>, %arg13: memref<32x64xbf16, #tpu.memory_space<vmem>>, %arg14: memref<1x64xf32, #tpu.memory_space<vmem>>, %arg15: memref<64x32xbf16, #tpu.memory_space<vmem>>, %arg16: memref<1x32xf32, #tpu.memory_space<vmem>>, %arg17: memref<1x8x32xf32, #tpu.memory_space<vmem>>) attributes {dimension_semantics = [#tpu.dimension_semantics<parallel>, #tpu.dimension_semantics<parallel>], iteration_bounds = array<i64: 2, 1>, scalar_prefetch = 0 : i64, scratch_operands = 0 : i64, tpu.core_type = #tpu.core_type<tc>, window_params = [{transform_indices = @transform_0, window_bounds = array<i64: 1, 8, 32>}, {transform_indices = @transform_1, window_bounds = array<i64: 1, 8, 8>}, {transform_indices = @transform_2, window_bounds = array<i64: 1, 4, 8, 8>}, {transform_indices = @transform_3, window_bounds = array<i64: 1, 4, 8, 8>}, {transform_indices = @transform_4, window_bounds = array<i64: 1, 4, 8, 8>}, {pipeline_mode = #tpu.pipeline_mode<synchronous>, transform_indices = @transform_5, window_bounds = array<i64: 4, 8, 32>}, {pipeline_mode = #tpu.pipeline_mode<synchronous>, transform_indices = @transform_6, window_bounds = array<i64: 1, 32>}, {pipeline_mode = #tpu.pipeline_mode<synchronous>, transform_indices = @transform_7, window_bounds = array<i64: 1, 32>}, {pipeline_mode = #tpu.pipeline_mode<synchronous>, transform_indices = @transform_8, window_bounds = array<i64: 1, 32>}, {pipeline_mode = #tpu.pipeline_mode<synchronous>, transform_indices = @transform_9, window_bounds = array<i64: 1, 32>}, {pipeline_mode = #tpu.pipeline_mode<synchronous>, transform_indices = @transform_10, window_bounds = array<i64: 1, 32>}, {pipeline_mode = #tpu.pipeline_mode<synchronous>, transform_indices = @transform_11, window_bounds = array<i64: 32, 64>}, {pipeline_mode = #tpu.pipeline_mode<synchronous>, transform_indices = @transform_12, window_bounds = array<i64: 1, 64>}, {pipeline_mode = #tpu.pipeline_mode<synchronous>, transform_indices = @transform_13, window_bounds = array<i64: 64, 32>}, {pipeline_mode = #tpu.pipeline_mode<synchronous>, transform_indices = @transform_14, window_bounds = array<i64: 1, 32>}, {transform_indices = @transform_15, window_bounds = array<i64: 1, 8, 32>}]} {
    %c0 = arith.constant 0 : index
    %c0_0 = arith.constant 0 : index
    %c0_1 = arith.constant 0 : index
    %0 = vector.load %arg2[%c0, %c0_0, %c0_1] : memref<1x8x32xf32, #tpu.memory_space<vmem>>, vector<1x8x32xf32>
    %1 = vector.shape_cast %0 : vector<1x8x32xf32> to vector<8x32xf32>
    %c0_2 = arith.constant 0 : index
    %c0_3 = arith.constant 0 : index
    %c0_4 = arith.constant 0 : index
    %c0_5 = arith.constant 0 : index
    %2 = vector.load %arg4[%c0_2, %c0_3, %c0_4, %c0_5] : memref<1x4x8x8xbf16, #tpu.memory_space<vmem>>, vector<1x4x8x8xbf16>
    %3 = vector.shape_cast %2 : vector<1x4x8x8xbf16> to vector<4x8x8xbf16>
    %c0_6 = arith.constant 0 : index
    %c0_7 = arith.constant 0 : index
    %c0_8 = arith.constant 0 : index
    %c0_9 = arith.constant 0 : index
    %4 = vector.load %arg5[%c0_6, %c0_7, %c0_8, %c0_9] : memref<1x4x8x8xbf16, #tpu.memory_space<vmem>>, vector<1x4x8x8xbf16>
    %5 = vector.shape_cast %4 : vector<1x4x8x8xbf16> to vector<4x8x8xbf16>
    %c0_10 = arith.constant 0 : index
    %c0_11 = arith.constant 0 : index
    %c0_12 = arith.constant 0 : index
    %c0_13 = arith.constant 0 : index
    %6 = vector.load %arg6[%c0_10, %c0_11, %c0_12, %c0_13] : memref<1x4x8x8xbf16, #tpu.memory_space<vmem>>, vector<1x4x8x8xbf16>
    %7 = vector.shape_cast %6 : vector<1x4x8x8xbf16> to vector<4x8x8xbf16>
    "tpu.trace_start"() <{level = 10 : i32, message = "hqd,hkd->hqk"}> : () -> ()
    %cst = arith.constant dense<0.000000e+00> : vector<4x8x8xf32>
    %8 = tpu.matmul %3, %5, %cst {dimension_numbers = #tpu.dot_dimension_numbers<[2], [2], [1], [1], [0, 0, 0, 1, 1, 1], [0], [0]>} : vector<4x8x8xbf16>, vector<4x8x8xbf16>, vector<4x8x8xf32> -> vector<4x8x8xf32>
    "tpu.trace_stop"() : () -> ()
    %c0_14 = arith.constant 0 : index
    %c0_15 = arith.constant 0 : index
    %c0_16 = arith.constant 0 : index
    %9 = vector.load %arg3[%c0_14, %c0_15, %c0_16] : memref<1x8x8xbf16, #tpu.memory_space<vmem>>, vector<1x8x8xbf16>
    %10 = vector.shape_cast %9 : vector<1x8x8xbf16> to vector<8x8xbf16>
    %11 = arith.extf %10 : vector<8x8xbf16> to vector<8x8xf32>
    %12 = vector.shape_cast %11 : vector<8x8xf32> to vector<1x8x8xf32>
    %13 = vector.broadcast %12 : vector<1x8x8xf32> to vector<4x8x8xf32>
    %14 = arith.addf %8, %13 : vector<4x8x8xf32>
    %cst_17 = arith.constant dense<0xFF800000> : vector<4x8xf32>
    %15 = vector.multi_reduction <maximumf>, %14, %cst_17 [2] : vector<4x8x8xf32> to vector<4x8xf32>
    %cst_18 = arith.constant 0xFF800000 : f32
    %16 = vector.broadcast %cst_18 : f32 to vector<4x8xf32>
    %17 = arith.maximumf %16, %15 : vector<4x8xf32>
    %18 = vector.shape_cast %17 : vector<4x8xf32> to vector<4x8x1xf32>
    %19 = vector.broadcast %18 : vector<4x8x1xf32> to vector<4x8x8xf32>
    %20 = arith.subf %14, %19 : vector<4x8x8xf32>
    %21 = math.exp %20 : vector<4x8x8xf32>
    %cst_19 = arith.constant dense<0.000000e+00> : vector<4x8xf32>
    %22 = vector.multi_reduction <add>, %21, %cst_19 [2] : vector<4x8x8xf32> to vector<4x8xf32>
    %23 = vector.shape_cast %22 : vector<4x8xf32> to vector<4x8x1xf32>
    %24 = vector.broadcast %23 : vector<4x8x1xf32> to vector<4x8x8xf32>
    %25 = arith.divf %21, %24 : vector<4x8x8xf32>
    %26 = arith.truncf %25 : vector<4x8x8xf32> to vector<4x8x8xbf16>
    "tpu.trace_start"() <{level = 10 : i32, message = "hqk,hkd->hqd"}> : () -> ()
    %cst_20 = arith.constant dense<0.000000e+00> : vector<4x8x8xf32>
    %27 = tpu.matmul %26, %7, %cst_20 {dimension_numbers = #tpu.dot_dimension_numbers<[2], [1], [1], [2], [0, 0, 0, 1, 1, 2], [0], [0]>} : vector<4x8x8xbf16>, vector<4x8x8xbf16>, vector<4x8x8xf32> -> vector<4x8x8xf32>
    "tpu.trace_stop"() : () -> ()
    %28 = arith.truncf %27 : vector<4x8x8xf32> to vector<4x8x8xbf16>
    %c0_21 = arith.constant 0 : index
    %c0_22 = arith.constant 0 : index
    %c0_23 = arith.constant 0 : index
    %29 = vector.load %arg7[%c0_21, %c0_22, %c0_23] : memref<4x8x32xbf16, #tpu.memory_space<vmem>>, vector<4x8x32xbf16>
    "tpu.trace_start"() <{level = 10 : i32, message = "hqd,hde->hqe"}> : () -> ()
    %cst_24 = arith.constant dense<0.000000e+00> : vector<4x8x32xf32>
    %30 = tpu.matmul %28, %29, %cst_24 {dimension_numbers = #tpu.dot_dimension_numbers<[2], [1], [1], [2], [0, 0, 0, 1, 1, 2], [0], [0]>} : vector<4x8x8xbf16>, vector<4x8x32xbf16>, vector<4x8x32xf32> -> vector<4x8x32xf32>
    "tpu.trace_stop"() : () -> ()
    %cst_25 = arith.constant dense<0.000000e+00> : vector<8x32xf32>
    %31 = vector.multi_reduction <add>, %30, %cst_25 [0] : vector<4x8x32xf32> to vector<8x32xf32>
    %c0_26 = arith.constant 0 : index
    %c0_27 = arith.constant 0 : index
    %32 = vector.load %arg8[%c0_26, %c0_27] : memref<1x32xf32, #tpu.memory_space<vmem>>, vector<1x32xf32>
    %33 = vector.broadcast %32 : vector<1x32xf32> to vector<8x32xf32>
    %34 = arith.addf %31, %33 : vector<8x32xf32>
    %35 = arith.addf %1, %34 : vector<8x32xf32>
    %c0_28 = arith.constant 0 : index
    %c0_29 = arith.constant 0 : index
    %36 = vector.load %arg9[%c0_28, %c0_29] : memref<1x32xf32, #tpu.memory_space<vmem>>, vector<1x32xf32>
    %c0_30 = arith.constant 0 : index
    %c0_31 = arith.constant 0 : index
    %37 = vector.load %arg10[%c0_30, %c0_31] : memref<1x32xf32, #tpu.memory_space<vmem>>, vector<1x32xf32>
    %cst_32 = arith.constant dense<0.000000e+00> : vector<8xf32>
    %38 = vector.multi_reduction <add>, %35, %cst_32 [1] : vector<8x32xf32> to vector<8xf32>
    %39 = vector.shape_cast %38 : vector<8xf32> to vector<8x1xf32>
    %cst_33 = arith.constant 3.200000e+01 : f32
    %40 = vector.broadcast %cst_33 : f32 to vector<8x1xf32>
    %41 = arith.divf %39, %40 : vector<8x1xf32>
    %42 = vector.broadcast %41 : vector<8x1xf32> to vector<8x32xf32>
    %43 = arith.subf %35, %42 : vector<8x32xf32>
    %44 = arith.mulf %43, %43 : vector<8x32xf32>
    %cst_34 = arith.constant dense<0.000000e+00> : vector<8xf32>
    %45 = vector.multi_reduction <add>, %44, %cst_34 [1] : vector<8x32xf32> to vector<8xf32>
    %46 = vector.shape_cast %45 : vector<8xf32> to vector<8x1xf32>
    %cst_35 = arith.constant 3.200000e+01 : f32
    %47 = vector.broadcast %cst_35 : f32 to vector<8x1xf32>
    %48 = arith.divf %46, %47 : vector<8x1xf32>
    %49 = vector.broadcast %41 : vector<8x1xf32> to vector<8x32xf32>
    %50 = arith.subf %35, %49 : vector<8x32xf32>
    %cst_36 = arith.constant 9.99999974E-6 : f32
    %51 = vector.broadcast %cst_36 : f32 to vector<8x1xf32>
    %52 = arith.addf %48, %51 : vector<8x1xf32>
    %53 = math.rsqrt %52 : vector<8x1xf32>
    %54 = vector.broadcast %53 : vector<8x1xf32> to vector<8x32xf32>
    %55 = arith.mulf %50, %54 : vector<8x32xf32>
    %56 = vector.broadcast %36 : vector<1x32xf32> to vector<8x32xf32>
    %57 = arith.mulf %55, %56 : vector<8x32xf32>
    %58 = vector.broadcast %37 : vector<1x32xf32> to vector<8x32xf32>
    %59 = arith.addf %57, %58 : vector<8x32xf32>
    %60 = arith.truncf %59 : vector<8x32xf32> to vector<8x32xbf16>
    %c0_37 = arith.constant 0 : index
    %c0_38 = arith.constant 0 : index
    %61 = vector.load %arg13[%c0_37, %c0_38] : memref<32x64xbf16, #tpu.memory_space<vmem>>, vector<32x64xbf16>
    %cst_39 = arith.constant dense<0.000000e+00> : vector<8x64xf32>
    %62 = tpu.matmul %60, %61, %cst_39 {dimension_numbers = #tpu.dot_dimension_numbers<[1], [0], [0], [1], [0, 0, 1, 1], [], []>} : vector<8x32xbf16>, vector<32x64xbf16>, vector<8x64xf32> -> vector<8x64xf32>
    %c0_40 = arith.constant 0 : index
    %c0_41 = arith.constant 0 : index
    %63 = vector.load %arg14[%c0_40, %c0_41] : memref<1x64xf32, #tpu.memory_space<vmem>>, vector<1x64xf32>
    %64 = vector.broadcast %63 : vector<1x64xf32> to vector<8x64xf32>
    %65 = arith.addf %62, %64 : vector<8x64xf32>
    %cst_42 = arith.constant 0.000000e+00 : f32
    %66 = vector.broadcast %cst_42 : f32 to vector<8x64xf32>
    %67 = arith.maximumf %65, %66 : vector<8x64xf32>
    %68 = arith.truncf %67 : vector<8x64xf32> to vector<8x64xbf16>
    %c0_43 = arith.constant 0 : index
    %c0_44 = arith.constant 0 : index
    %69 = vector.load %arg15[%c0_43, %c0_44] : memref<64x32xbf16, #tpu.memory_space<vmem>>, vector<64x32xbf16>
    %cst_45 = arith.constant dense<0.000000e+00> : vector<8x32xf32>
    %70 = tpu.matmul %68, %69, %cst_45 {dimension_numbers = #tpu.dot_dimension_numbers<[1], [0], [0], [1], [0, 0, 1, 1], [], []>} : vector<8x64xbf16>, vector<64x32xbf16>, vector<8x32xf32> -> vector<8x32xf32>
    %c0_46 = arith.constant 0 : index
    %c0_47 = arith.constant 0 : index
    %71 = vector.load %arg16[%c0_46, %c0_47] : memref<1x32xf32, #tpu.memory_space<vmem>>, vector<1x32xf32>
    %72 = vector.broadcast %71 : vector<1x32xf32> to vector<8x32xf32>
    %73 = arith.addf %70, %72 : vector<8x32xf32>
    %74 = arith.addf %59, %73 : vector<8x32xf32>
    %c0_48 = arith.constant 0 : index
    %c0_49 = arith.constant 0 : index
    %75 = vector.load %arg11[%c0_48, %c0_49] : memref<1x32xf32, #tpu.memory_space<vmem>>, vector<1x32xf32>
    %c0_50 = arith.constant 0 : index
    %c0_51 = arith.constant 0 : index
    %76 = vector.load %arg12[%c0_50, %c0_51] : memref<1x32xf32, #tpu.memory_space<vmem>>, vector<1x32xf32>
    %cst_52 = arith.constant dense<0.000000e+00> : vector<8xf32>
    %77 = vector.multi_reduction <add>, %74, %cst_52 [1] : vector<8x32xf32> to vector<8xf32>
    %78 = vector.shape_cast %77 : vector<8xf32> to vector<8x1xf32>
    %cst_53 = arith.constant 3.200000e+01 : f32
    %79 = vector.broadcast %cst_53 : f32 to vector<8x1xf32>
    %80 = arith.divf %78, %79 : vector<8x1xf32>
    %81 = vector.broadcast %80 : vector<8x1xf32> to vector<8x32xf32>
    %82 = arith.subf %74, %81 : vector<8x32xf32>
    %83 = arith.mulf %82, %82 : vector<8x32xf32>
    %cst_54 = arith.constant dense<0.000000e+00> : vector<8xf32>
    %84 = vector.multi_reduction <add>, %83, %cst_54 [1] : vector<8x32xf32> to vector<8xf32>
    %85 = vector.shape_cast %84 : vector<8xf32> to vector<8x1xf32>
    %cst_55 = arith.constant 3.200000e+01 : f32
    %86 = vector.broadcast %cst_55 : f32 to vector<8x1xf32>
    %87 = arith.divf %85, %86 : vector<8x1xf32>
    %88 = vector.broadcast %80 : vector<8x1xf32> to vector<8x32xf32>
    %89 = arith.subf %74, %88 : vector<8x32xf32>
    %cst_56 = arith.constant 9.99999974E-6 : f32
    %90 = vector.broadcast %cst_56 : f32 to vector<8x1xf32>
    %91 = arith.addf %87, %90 : vector<8x1xf32>
    %92 = math.rsqrt %91 : vector<8x1xf32>
    %93 = vector.broadcast %92 : vector<8x1xf32> to vector<8x32xf32>
    %94 = arith.mulf %89, %93 : vector<8x32xf32>
    %95 = vector.broadcast %75 : vector<1x32xf32> to vector<8x32xf32>
    %96 = arith.mulf %94, %95 : vector<8x32xf32>
    %97 = vector.broadcast %76 : vector<1x32xf32> to vector<8x32xf32>
    %98 = arith.addf %96, %97 : vector<8x32xf32>
    %c0_57 = arith.constant 0 : index
    %c0_58 = arith.constant 0 : index
    %c0_59 = arith.constant 0 : index
    %99 = vector.load %arg17[%c0_57, %c0_58, %c0_59] : memref<1x8x32xf32, #tpu.memory_space<vmem>>, vector<1x8x32xf32>
    %100 = vector.shape_cast %99 : vector<1x8x32xf32> to vector<8x32xf32>
    %101 = vector.shape_cast %98 : vector<8x32xf32> to vector<1x8x32xf32>
    tpu.vector_store %arg17[%c0_57, %c0_58, %c0_59], %101 {strides = array<i32>} : memref<1x8x32xf32, #tpu.memory_space<vmem>>, vector<1x8x32xf32>,
    return
  }
  func.func @transform_0(%arg0: i32, %arg1: i32) -> (i32, i32, i32) {
    %c0_i32 = arith.constant 0 : i32
    %c0_i32_0 = arith.constant 0 : i32
    return %arg0, %arg1, %c0_i32 : i32, i32, i32
  }
  func.func @transform_1(%arg0: i32, %arg1: i32) -> (i32, i32, i32) {
    %c0_i32 = arith.constant 0 : i32
    %c0_i32_0 = arith.constant 0 : i32
    return %arg0, %arg1, %c0_i32 : i32, i32, i32
  }
  func.func @transform_2(%arg0: i32, %arg1: i32) -> (i32, i32, i32, i32) {
    %c0_i32 = arith.constant 0 : i32
    %c0_i32_0 = arith.constant 0 : i32
    %c0_i32_1 = arith.constant 0 : i32
    return %arg0, %c0_i32, %arg1, %c0_i32_0 : i32, i32, i32, i32
  }
  func.func @transform_3(%arg0: i32, %arg1: i32) -> (i32, i32, i32, i32) {
    %c0_i32 = arith.constant 0 : i32
    %c0_i32_0 = arith.constant 0 : i32
    %c0_i32_1 = arith.constant 0 : i32
    %c0_i32_2 = arith.constant 0 : i32
    return %arg0, %c0_i32, %c0_i32_0, %c0_i32_1 : i32, i32, i32, i32
  }
  func.func @transform_4(%arg0: i32, %arg1: i32) -> (i32, i32, i32, i32) {
    %c0_i32 = arith.constant 0 : i32
    %c0_i32_0 = arith.constant 0 : i32
    %c0_i32_1 = arith.constant 0 : i32
    %c0_i32_2 = arith.constant 0 : i32
    return %arg0, %c0_i32, %c0_i32_0, %c0_i32_1 : i32, i32, i32, i32
  }
  func.func @transform_5(%arg0: i32, %arg1: i32) -> (i32, i32, i32) {
    %c0_i32 = arith.constant 0 : i32
    %c0_i32_0 = arith.constant 0 : i32
    %c0_i32_1 = arith.constant 0 : i32
    %c0_i32_2 = arith.constant 0 : i32
    return %c0_i32, %c0_i32_0, %c0_i32_1 : i32, i32, i32
  }
  func.func @transform_6(%arg0: i32, %arg1: i32) -> (i32, i32) {
    %c0_i32 = arith.constant 0 : i32
    %c0_i32_0 = arith.constant 0 : i32
    %c0_i32_1 = arith.constant 0 : i32
    return %c0_i32, %c0_i32_0 : i32, i32
  }
  func.func @transform_7(%arg0: i32, %arg1: i32) -> (i32, i32) {
    %c0_i32 = arith.constant 0 : i32
    %c0_i32_0 = arith.constant 0 : i32
    %c0_i32_1 = arith.constant 0 : i32
    return %c0_i32, %c0_i32_0 : i32, i32
  }
  func.func @transform_8(%arg0: i32, %arg1: i32) -> (i32, i32) {
    %c0_i32 = arith.constant 0 : i32
    %c0_i32_0 = arith.constant 0 : i32
    %c0_i32_1 = arith.constant 0 : i32
    return %c0_i32, %c0_i32_0 : i32, i32
  }
  func.func @transform_9(%arg0: i32, %arg1: i32) -> (i32, i32) {
    %c0_i32 = arith.constant 0 : i32
    %c0_i32_0 = arith.constant 0 : i32
    %c0_i32_1 = arith.constant 0 : i32
    return %c0_i32, %c0_i32_0 : i32, i32
  }
  func.func @transform_10(%arg0: i32, %arg1: i32) -> (i32, i32) {
    %c0_i32 = arith.constant 0 : i32
    %c0_i32_0 = arith.constant 0 : i32
    %c0_i32_1 = arith.constant 0 : i32
    return %c0_i32, %c0_i32_0 : i32, i32
  }
  func.func @transform_11(%arg0: i32, %arg1: i32) -> (i32, i32) {
    %c0_i32 = arith.constant 0 : i32
    %c0_i32_0 = arith.constant 0 : i32
    %c0_i32_1 = arith.constant 0 : i32
    return %c0_i32, %c0_i32_0 : i32, i32
  }
  func.func @transform_12(%arg0: i32, %arg1: i32) -> (i32, i32) {
    %c0_i32 = arith.constant 0 : i32
    %c0_i32_0 = arith.constant 0 : i32
    %c0_i32_1 = arith.constant 0 : i32
    return %c0_i32, %c0_i32_0 : i32, i32
  }
  func.func @transform_13(%arg0: i32, %arg1: i32) -> (i32, i32) {
    %c0_i32 = arith.constant 0 : i32
    %c0_i32_0 = arith.constant 0 : i32
    %c0_i32_1 = arith.constant 0 : i32
    return %c0_i32, %c0_i32_0 : i32, i32
  }
  func.func @transform_14(%arg0: i32, %arg1: i32) -> (i32, i32) {
    %c0_i32 = arith.constant 0 : i32
    %c0_i32_0 = arith.constant 0 : i32
    %c0_i32_1 = arith.constant 0 : i32
    return %c0_i32, %c0_i32_0 : i32, i32
  }
  func.func @transform_15(%arg0: i32, %arg1: i32) -> (i32, i32, i32) {
    %c0_i32 = arith.constant 0 : i32
    %c0_i32_0 = arith.constant 0 : i32
    return %arg0, %arg1, %c0_i32 : i32, i32, i32
  }
}

</mosaic_0001>

<llo_original>
// kernel: encoder_layer.2
$region0: #{encoder_layer.2}
  #allocation0 [shape = 'u32[]', space=smem, size = 0x4, offset = 0x4, fixed_abs, tag = 'smem constant byte address 0x4 - core index']
  #allocation1 [shape = 'u32[144,128]{1,0:T(1,128)}', space=vmem, size = 0x12000, scoped, tag = 'internal scratch']
  %s0 = inlined_call_operand.hbm [shape: f32[2,8,32], index: 0, kind: input, shape index: {}]
  %s1 = inlined_call_operand.hbm [shape: bf16[32,96], index: 1, kind: input, shape index: {}]
  %s2 = inlined_call_operand.hbm [shape: f32[1,96], index: 2, kind: input, shape index: {}]
  %s3 = inlined_call_operand.hbm [shape: f32[1,32], index: 3, kind: input, shape index: {}]
  %s4 = inlined_call_operand.hbm [shape: f32[1,32], index: 4, kind: input, shape index: {}]
  %s5 = inlined_call_operand.hbm [shape: bf16[2,8,96], index: 5, kind: output, shape index: {}]
  %s6 = sld [smem:[#allocation0]]
  $region73: #{encoder_layer.2} parent=0
    _
  %s8 = ssub.s32 1, %s6
  %s9 = scalar_select 0, %s8, %s6
  $region1: #{encoder_layer.2} parent=0
    #allocation2 [shape = 'u8[8192]{0}', space=vmem, size = 0x2000, scoped, tag = 'input window, operand 0']
    #allocation3 [shape = 's32[2]{0}', space=sflag, size = 0x8, scoped, tag = 'scoped memory for encoder_layer.2']
    #allocation4 [shape = 's32[2]{0}', space=sflag, size = 0x8, scoped, tag = 'scoped memory for encoder_layer.2']
    #allocation5 [shape = 'u8[8192]{0}', space=vmem, size = 0x2000, scoped, tag = 'input window, operand 1, single buffered']
    #allocation6 [shape = 's32[1]{0}', space=sflag, size = 0x4, scoped, tag = 'scoped memory for encoder_layer.2']
    #allocation7 [shape = 'u8[512]{0}', space=vmem, size = 0x400, scoped, tag = 'input window, operand 2, single buffered']
    #allocation8 [shape = 'u8[512]{0}', space=vmem, size = 0x400, scoped, tag = 'input window, operand 3, single buffered']
    #allocation9 [shape = 's32[1]{0}', space=sflag, size = 0x4, scoped, tag = 'scoped memory for encoder_layer.2']
    #allocation10 [shape = 'u8[512]{0}', space=vmem, size = 0x400, scoped, tag = 'input window, operand 4, single buffered']
    #allocation11 [shape = 'u8[4096]{0}', space=vmem, size = 0x1000, scoped, tag = 'output window, operand 0']
    %10 = vsyncpa [#allocation3], 0
    %s11 = scalar_lea.sflag [#allocation3], 1
    %12 = vsyncpa %s11, 0
    %13 = vsyncpa [#allocation6], 0
    %14 = vsyncpa [#allocation9], 0
    %15 = vsyncpa [#allocation4], 0
    %s16 = scalar_lea.sflag [#allocation4], 1
    %17 = vsyncpa %s16, 0
    loop: start=0, step=1, limit=4
    $region2: #{encoder_layer.2} parent=1 // loop_pre_header
      _
    $region3: #{encoder_layer.2} parent=1 // loop_header
      %s19 = sphi 0, %s23
      %p20 = scmp.ge.s32.totalorder %s19, 4
      %s26 = sphi 0, %s38
      %s27 = sphi 0, %s34
      %s28 = sphi 0, %s26
      %s29 = sphi 0, %s27
      %s30 = sphi 0, %s28
      %s31 = sphi 0, %s29
      %s43 = sphi 0, %s45
      %s46 = sphi 0, %s43
      %s47 = sphi 0, %s46
      %s63 = sphi 0, %s47
      %s67 = sphi 0, %s67
      %s69 = sphi 0, %s67
      %s70 = sphi 0, %s69
      %s84 = sphi 0, %s70
      %s88 = sphi 0, %s88
      %s90 = sphi 0, %s88
      %s91 = sphi 0, %s90
      %s105 = sphi 0, %s91
      %s109 = sphi 0, %s109
      %s111 = sphi 0, %s109
      %s112 = sphi 0, %s111
      %s126 = sphi 0, %s112
      %s130 = sphi 0, %s130
      %s132 = sphi 0, %s130
      %s133 = sphi 0, %s132
      %s147 = sphi 0, %s133
      %s155 = sphi 0, %s157
      %s158 = sphi 0, %s155
      %s159 = sphi 0, %s158
      %s175 = sphi 0, %s159
    $region4: #{encoder_layer.2} parent=1 // loop_header_branch
      %22 = sbr.rel (%p20) target = $region8
    $region5: #{encoder_layer.2} parent=1 // loop_body
      %s24 = ssub.s32 %s19, 1
      %s25 = ssub.s32 %s19, 2
      %s32 = sadd.s32 1, %s27
      %p33 = scmp.ge.s32.totalorder %s32, 1
      %s34 = scalar_select %p33, 0, %s32
      %s35 = sadd.s32 1, %s26
      %s36 = scalar_select %p33, %s35, %s26
      %p37 = scmp.ge.s32.totalorder %s36, 2
      %s38 = scalar_select %p37, 0, %s36
      %s39 = ssub.s32 %s26, %s38
      %s40 = ssub.s32 %s27, %s34
      %s41 = sor.u32 %s39, %s40
      %p42 = scmp.eq.s32.totalorder %s41, 0
      %s44 = sadd.s32 %s43, 1
      %s45 = scalar_select %p42, %s43, %s44
      %p48 = pneg %p42
      %p49 = scmp.eq.s32.totalorder %s19, 1
      %p50 = por %p48, %p49
      %p51 = scmp.ne.s32.totalorder %s43, %s46
      %p52 = scmp.eq.s32.totalorder %s19, 0
      %p53 = por %p51, %p52
      %p54 = scmp.ne.s32.totalorder %s43, %s46
      %p55 = scmp.eq.s32.totalorder %s24, 1
      %p56 = por %p54, %p55
      %p57 = scmp.ne.s32.totalorder %s46, %s47
      %p58 = scmp.eq.s32.totalorder %s24, 0
      %p59 = por %p57, %p58
      %p60 = scmp.ne.s32.totalorder %s46, %s47
      %p61 = scmp.eq.s32.totalorder %s25, 1
      %p62 = por %p60, %p61
      %p64 = scmp.ne.s32.totalorder %s47, %s63
      %p65 = scmp.eq.s32.totalorder %s25, 0
      %p66 = por %p64, %p65
      %s68 = sadd.s32 %s67, 1
      %p71 = scmp.eq.s32.totalorder %s19, 1
      %p72 = scmp.ne.s32.totalorder %s67, %s69
      %p73 = scmp.eq.s32.totalorder %s19, 0
      %p74 = por %p72, %p73
      %p75 = scmp.ne.s32.totalorder %s67, %s69
      %p76 = scmp.eq.s32.totalorder %s24, 1
      %p77 = por %p75, %p76
      %p78 = scmp.ne.s32.totalorder %s69, %s70
      %p79 = scmp.eq.s32.totalorder %s24, 0
      %p80 = por %p78, %p79
      %p81 = scmp.ne.s32.totalorder %s69, %s70
      %p82 = scmp.eq.s32.totalorder %s25, 1
      %p83 = por %p81, %p82
      %p85 = scmp.ne.s32.totalorder %s70, %s84
      %p86 = scmp.eq.s32.totalorder %s25, 0
      %p87 = por %p85, %p86
      %s89 = sadd.s32 %s88, 1
      %p92 = scmp.eq.s32.totalorder %s19, 1
      %p93 = scmp.ne.s32.totalorder %s88, %s90
      %p94 = scmp.eq.s32.totalorder %s19, 0
      %p95 = por %p93, %p94
      %p96 = scmp.ne.s32.totalorder %s88, %s90
      %p97 = scmp.eq.s32.totalorder %s24, 1
      %p98 = por %p96, %p97
      %p99 = scmp.ne.s32.totalorder %s90, %s91
      %p100 = scmp.eq.s32.totalorder %s24, 0
      %p101 = por %p99, %p100
      %p102 = scmp.ne.s32.totalorder %s90, %s91
      %p103 = scmp.eq.s32.totalorder %s25, 1
      %p104 = por %p102, %p103
      %p106 = scmp.ne.s32.totalorder %s91, %s105
      %p107 = scmp.eq.s32.totalorder %s25, 0
      %p108 = por %p106, %p107
      %s110 = sadd.s32 %s109, 1
      %p113 = scmp.eq.s32.totalorder %s19, 1
      %p114 = scmp.ne.s32.totalorder %s109, %s111
      %p115 = scmp.eq.s32.totalorder %s19, 0
      %p116 = por %p114, %p115
      %p117 = scmp.ne.s32.totalorder %s109, %s111
      %p118 = scmp.eq.s32.totalorder %s24, 1
      %p119 = por %p117, %p118
      %p120 = scmp.ne.s32.totalorder %s111, %s112
      %p121 = scmp.eq.s32.totalorder %s24, 0
      %p122 = por %p120, %p121
      %p123 = scmp.ne.s32.totalorder %s111, %s112
      %p124 = scmp.eq.s32.totalorder %s25, 1
      %p125 = por %p123, %p124
      %p127 = scmp.ne.s32.totalorder %s112, %s126
      %p128 = scmp.eq.s32.totalorder %s25, 0
      %p129 = por %p127, %p128
      %s131 = sadd.s32 %s130, 1
      %p134 = scmp.eq.s32.totalorder %s19, 1
      %p135 = scmp.ne.s32.totalorder %s130, %s132
      %p136 = scmp.eq.s32.totalorder %s19, 0
      %p137 = por %p135, %p136
      %p138 = scmp.ne.s32.totalorder %s130, %s132
      %p139 = scmp.eq.s32.totalorder %s24, 1
      %p140 = por %p138, %p139
      %p141 = scmp.ne.s32.totalorder %s132, %s133
      %p142 = scmp.eq.s32.totalorder %s24, 0
      %p143 = por %p141, %p142
      %p144 = scmp.ne.s32.totalorder %s132, %s133
      %p145 = scmp.eq.s32.totalorder %s25, 1
      %p146 = por %p144, %p145
      %p148 = scmp.ne.s32.totalorder %s133, %s147
      %p149 = scmp.eq.s32.totalorder %s25, 0
      %p150 = por %p148, %p149
      %s151 = ssub.s32 %s26, %s38
      %s152 = ssub.s32 %s27, %s34
      %s153 = sor.u32 %s151, %s152
      %p154 = scmp.eq.s32.totalorder %s153, 0
      %s156 = sadd.s32 %s155, 1
      %s157 = scalar_select %p154, %s155, %s156
      %p160 = pneg %p154
      %p161 = scmp.eq.s32.totalorder %s19, 1
      %p162 = por %p160, %p161
      %p163 = scmp.ne.s32.totalorder %s155, %s158
      %p164 = scmp.eq.s32.totalorder %s19, 0
      %p165 = por %p163, %p164
      %p166 = scmp.ne.s32.totalorder %s155, %s158
      %p167 = scmp.eq.s32.totalorder %s24, 1
      %p168 = por %p166, %p167
      %p169 = scmp.ne.s32.totalorder %s158, %s159
      %p170 = scmp.eq.s32.totalorder %s24, 0
      %p171 = por %p169, %p170
      %p172 = scmp.ne.s32.totalorder %s158, %s159
      %p173 = scmp.eq.s32.totalorder %s25, 1
      %p174 = por %p172, %p173
      %p176 = scmp.ne.s32.totalorder %s159, %s175
      %p177 = scmp.eq.s32.totalorder %s25, 0
      %p178 = por %p176, %p177
      %p179 = scmp.le.s32.totalorder 1, %s19
      %p180 = scmp.lt.s32.totalorder %s19, 3
      %p181 = pnand %p179, %p180
      %p182 = pneg %p181
      // Predicated region
      $region9: #{encoder_layer.2} parent=5 // pred_check
        _
      $region10: #{encoder_layer.2} parent=5 // pred_check_branch
        %184 = sbr.rel (%p181) target = $region12
      $region11: #{encoder_layer.2} parent=5 // pred_region
        %s185 = ssub.s32 %s19, 1
        // Predicated region
        $region13: #{encoder_layer.2} parent=11 // pred_check
          %p186 = pneg %p80
        $region14: #{encoder_layer.2} parent=11 // pred_check_branch
          %188 = sbr.rel (%p186) target = $region16
        $region15: #{encoder_layer.2} parent=11 // pred_region
          %s190 = ssub.s32 256, 256
          %191 = vsyncadd [#allocation6], %s190
          %s192 = sshll.u32 [#allocation5], 4
          %s193 = int_to_ptr.vmem [resolvable:$true] %s192
          %198 = dma.hbm_to_vmem [thread:$0]  %s1, 256, %s193, [#allocation6], 64, 64, 4
        $region16: #{encoder_layer.2} parent=11 // pred_fallthru
          _
        // Predicated region
        $region17: #{encoder_layer.2} parent=11 // pred_check
          %p199 = pneg %p101
        $region18: #{encoder_layer.2} parent=11 // pred_check_branch
          %201 = sbr.rel (%p199) target = $region20
        $region19: #{encoder_layer.2} parent=11 // pred_region
          %s203 = ssub.s32 16, 16
          %204 = vsyncadd [#allocation6], %s203
          %s206 = sshll.u32 [#allocation7], 4
          %s207 = int_to_ptr.vmem [resolvable:$true] %s206
          %209 = dma.hbm_to_vmem [thread:$0]  %s2, 16, %s207, [#allocation6]
        $region20: #{encoder_layer.2} parent=11 // pred_fallthru
          _
        // Predicated region
        $region21: #{encoder_layer.2} parent=11 // pred_check
          %p210 = pneg %p122
        $region22: #{encoder_layer.2} parent=11 // pred_check_branch
          %212 = sbr.rel (%p210) target = $region24
        $region23: #{encoder_layer.2} parent=11 // pred_region
          %s214 = ssub.s32 16, 16
          %215 = vsyncadd [#allocation9], %s214
          %s217 = sshll.u32 [#allocation8], 4
          %s218 = int_to_ptr.vmem [resolvable:$true] %s217
          %220 = dma.hbm_to_vmem [thread:$0]  %s3, 16, %s218, [#allocation9]
        $region24: #{encoder_layer.2} parent=11 // pred_fallthru
          _
        // Predicated region
        $region25: #{encoder_layer.2} parent=11 // pred_check
          %p221 = pneg %p143
        $region26: #{encoder_layer.2} parent=11 // pred_check_branch
          %223 = sbr.rel (%p221) target = $region28
        $region27: #{encoder_layer.2} parent=11 // pred_region
          %s225 = ssub.s32 16, 16
          %226 = vsyncadd [#allocation9], %s225
          %s228 = sshll.u32 [#allocation10], 4
          %s229 = int_to_ptr.vmem [resolvable:$true] %s228
          %231 = dma.hbm_to_vmem [thread:$0]  %s4, 16, %s229, [#allocation9]
        $region28: #{encoder_layer.2} parent=11 // pred_fallthru
          _
      $region12: #{encoder_layer.2} parent=5 // pred_fallthru
        _
      %p232 = scmp.lt.s32.totalorder %s19, 2
      // Predicated region
      $region29: #{encoder_layer.2} parent=5 // pred_check
        %p233 = pneg %p232
      $region30: #{encoder_layer.2} parent=5 // pred_check_branch
        %235 = sbr.rel (%p233) target = $region32
      $region31: #{encoder_layer.2} parent=5 // pred_region
        // Predicated region
        $region33: #{encoder_layer.2} parent=31 // pred_check
          %p236 = pneg %p53
        $region34: #{encoder_layer.2} parent=31 // pred_check_branch
          %238 = sbr.rel (%p236) target = $region36
        $region35: #{encoder_layer.2} parent=31 // pred_region
          %s239 = sand.u32 %s43, 1
          %s240 = scalar_lea.sflag [#allocation3], %s239
          %s241 = sand.u32 %s43, 1
          %s242 = smul.addr %s241, 8
          %s243 = scalar_lea.vmem [#allocation2], %s242
          %s245 = ssub.s32 128, 128
          %246 = vsyncadd %s240, %s245
          %s247 = sadd.s32 %s27, %s26
          %s248 = smul.addr %s247, 128
          %s249 = scalar_lea.hbm %s0, %s248
          %s251 = sshll.u32 %s243, 4
          %s252 = int_to_ptr.vmem [resolvable:$true] %s251
          %254 = dma.hbm_to_vmem [thread:$0]  %s249, 128, %s252, %s240
        $region36: #{encoder_layer.2} parent=31 // pred_fallthru
          _
      $region32: #{encoder_layer.2} parent=5 // pred_fallthru
        _
      %p255 = scmp.le.s32.totalorder 1, %s19
      %p256 = scmp.lt.s32.totalorder %s19, 3
      %p257 = pnand %p255, %p256
      %p258 = pneg %p257
      // Predicated region
      $region37: #{encoder_layer.2} parent=5 // pred_check
        _
      $region38: #{encoder_layer.2} parent=5 // pred_check_branch
        %260 = sbr.rel (%p257) target = $region40
      $region39: #{encoder_layer.2} parent=5 // pred_region
        %s261 = ssub.s32 %s19, 1
        %s262 = sand.u32 %s46, 1
        %s263 = scalar_lea.sflag [#allocation3], %s262
        %s264 = sand.u32 %s46, 1
        %s265 = smul.addr %s264, 8
        %s266 = scalar_lea.vmem [#allocation2], %s265
        // Predicated region
        $region41: #{encoder_layer.2} parent=39 // pred_check
          %p267 = pneg %p59
        $region42: #{encoder_layer.2} parent=39 // pred_check_branch
          %269 = sbr.rel (%p267) target = $region44
        $region43: #{encoder_layer.2} parent=39 // pred_region
          %270 = dma.done %s263, 128
        $region44: #{encoder_layer.2} parent=39 // pred_fallthru
          _
        // Predicated region
        $region45: #{encoder_layer.2} parent=39 // pred_check
          %p271 = pneg %p80
        $region46: #{encoder_layer.2} parent=39 // pred_check_branch
          %273 = sbr.rel (%p271) target = $region48
        $region47: #{encoder_layer.2} parent=39 // pred_region
          %274 = dma.done [#allocation6], 256
        $region48: #{encoder_layer.2} parent=39 // pred_fallthru
          _
        // Predicated region
        $region49: #{encoder_layer.2} parent=39 // pred_check
          %p275 = pneg %p101
        $region50: #{encoder_layer.2} parent=39 // pred_check_branch
          %277 = sbr.rel (%p275) target = $region52
        $region51: #{encoder_layer.2} parent=39 // pred_region
          %278 = dma.done [#allocation6], 16
        $region52: #{encoder_layer.2} parent=39 // pred_fallthru
          _
        // Predicated region
        $region53: #{encoder_layer.2} parent=39 // pred_check
          %p279 = pneg %p122
        $region54: #{encoder_layer.2} parent=39 // pred_check_branch
          %281 = sbr.rel (%p279) target = $region56
        $region55: #{encoder_layer.2} parent=39 // pred_region
          %282 = dma.done [#allocation9], 16
        $region56: #{encoder_layer.2} parent=39 // pred_fallthru
          _
        // Predicated region
        $region57: #{encoder_layer.2} parent=39 // pred_check
          %p283 = pneg %p143
        $region58: #{encoder_layer.2} parent=39 // pred_check_branch
          %285 = sbr.rel (%p283) target = $region60
        $region59: #{encoder_layer.2} parent=39 // pred_region
          %286 = dma.done [#allocation9], 16
        $region60: #{encoder_layer.2} parent=39 // pred_fallthru
          _
        %s287 = sand.u32 %s46, 1
        %s288 = scalar_lea.sflag [#allocation3], %s287
        %s289 = sand.u32 %s46, 1
        %s290 = smul.addr %s289, 8
        %s291 = scalar_lea.vmem [#allocation2], %s290
        %p292 = pneg %p59
        %p293 = pneg %p56
        %p294 = pneg %p80
        %p295 = pneg %p77
        %p296 = pneg %p101
        %p297 = pneg %p98
        %p298 = pneg %p122
        %p299 = pneg %p119
        %p300 = pneg %p143
        %p301 = pneg %p140
        %p302 = pneg %p171
        %p303 = pneg %p168
        %s304 = sand.u32 %s158, 1
        %s305 = scalar_lea.sflag [#allocation4], %s304
        %s306 = sand.u32 %s158, 1
        %s307 = smul.addr %s306, 4
        %s308 = scalar_lea.vmem [#allocation11], %s307
        %v310 = vld [vmem:[%s266] sm:$0xff]
        %v311 = vld [vmem:[#allocation8] sm:$0x1]
        %v312 = vld [vmem:[#allocation10] sm:$0x1]
        %vm313 = vcmask 261120
        %v314 = vsel %vm313, %v310, 0.0
        %315 = vadd.xlane.f32.xlu0 %v314
        %v316 = vpop.xlane.xlu0 %315
        %v317 = vrcp.pop 32.0
        %v318 = vmul.f32 %v316, %v317
        %v319 = vsub.f32 %v310, %v318
        %v320 = vmul.f32 %v319, %v319
        %v321 = vsel %vm313, %v320, 0.0
        %322 = vadd.xlane.f32.xlu0 %v321
        %v323 = vpop.xlane.xlu0 %322
        %v324 = vmul.f32 %v323, %v317
        %v325 = vadd.f32 %v324, 1e-05
        %v326 = vrsqrt.pop %v325
        %v327 = vmul.f32 %v319, %v326
        %v329 = vlaneseq
        %v330 = vshrl.u32 %v329, 7
        %v331 = vsub.s32 0, %v330
        %v332 = vrot.slane %v311, %v331
        %v334 = vmul.f32 %v327, %v332
        %v336 = vlaneseq
        %v337 = vshrl.u32 %v336, 7
        %v338 = vsub.s32 0, %v337
        %v339 = vrot.slane %v312, %v338
        %v341 = vadd.f32 %v334, %v339
        %v342 = vpack.c.bf16 %v341, %v341
        %v343 = vld [vmem:[#allocation5] sm:$0xf]
        %v344 = vld [vmem:[#allocation5 + $0x4] sm:$0xf]
        %v345 = vld [vmem:[#allocation5 + $0x8] sm:$0xf]
        %v346 = vld [vmem:[#allocation5 + $0xc] sm:$0xf]
        %v347 = vld [vmem:[#allocation7] sm:$0x1]
        %v349 = vlaneseq
        %v350 = vshrl.u32 %v349, 7
        %v351 = vsub.s32 0, %v350
        %v352 = vrot.slane %v347, %v351
        %v358 = vunpack.c.l.b16 %v343
        %v359 = vunpack.c.l.b16 %v344
        %v360 = vunpack.c.l.b16 %v345
        %v361 = vunpack.c.l.b16 %v346
        %v362 = vpack.c.b16 %v359, %v358
        %v363 = vpack.c.b16 %v361, %v360
        %v367 = vsel %vm313, %v342, 0
        %369 = vmatprep.subr.bf16.mxu0 0
        %370 = vmatpush1.bf16.msra.mxu0 %v362
        %371 = vmatprep.subr.bf16.mxu0 0
        %372 = vmatpush1.bf16.msra.mxu0 %v363
        %373 = vmatprep.subr.bf16.mxu0 0
        %374 = vmatpush1.bf16.msra.mxu0 0
        %375 = vmatprep.subr.bf16.mxu0 0
        %376 = vmatpush1.bf16.msra.mxu0 0
        %377 = vmatprep.subr.bf16.mxu0 0
        %378 = vmatpush1.bf16.msra.mxu0 0
        %379 = vmatprep.subr.bf16.mxu0 0
        %380 = vmatpush1.bf16.msra.mxu0 0
        %381 = vmatprep.subr.bf16.mxu0 0
        %382 = vmatpush1.bf16.msra.mxu0 0
        %383 = vmatprep.subr.bf16.mxu0 0
        %384 = vmatpush1.bf16.msra.mxu0 0
        %385 = vmatprep.subr.bf16.mxu0 0
        %386 = vmatpush1.bf16.msra.mxu0 0
        %387 = vmatprep.subr.bf16.mxu0 0
        %388 = vmatpush1.bf16.msra.mxu0 0
        %389 = vmatprep.subr.bf16.mxu0 0
        %390 = vmatpush1.bf16.msra.mxu0 0
        %391 = vmatprep.subr.bf16.mxu0 0
        %392 = vmatpush1.bf16.msra.mxu0 0
        %393 = vmatprep.subr.bf16.mxu0 0
        %394 = vmatpush1.bf16.msra.mxu0 0
        %395 = vmatprep.subr.bf16.mxu0 0
        %396 = vmatpush1.bf16.msra.mxu0 0
        %397 = vmatprep.subr.bf16.mxu0 0
        %398 = vmatpush1.bf16.msra.mxu0 0
        %399 = vmatprep.subr.bf16.mxu0 0
        %400 = vmatpush1.bf16.msra.mxu0 0
        %401 = vmatprep.mubr.bf16.mxu0 0
        %402 = vmatmul.mubr.bf16.gmra.mrb[0].mxu0 %v367
        %v403 = vpop.f32.mrb[0].mxu0
        %v404 = vadd.f32 %v352, %v403
        %v405 = vpop.f32.mrb[0].mxu0
        %v406 = vpop.f32.mrb[0].mxu0
        %v407 = vpop.f32.mrb[0].mxu0
        %408 = vdwg.mxu0
        %v409 = vpack.c.bf16 %v404, %v404
        %vm410 = vcmask 781312
        %411 = vst.msk [vmem:[%s308] sm:$0xf] %vm410, %v409
        %s412 = sand.u32 %s158, 1
        %s413 = scalar_lea.sflag [#allocation4], %s412
        %s414 = sand.u32 %s158, 1
        %s415 = smul.addr %s414, 4
        %s416 = scalar_lea.vmem [#allocation11], %s415
        // Predicated region
        $region61: #{encoder_layer.2} parent=39 // pred_check
          %p417 = pneg %p168
        $region62: #{encoder_layer.2} parent=39 // pred_check_branch
          %419 = sbr.rel (%p417) target = $region64
        $region63: #{encoder_layer.2} parent=39 // pred_region
          %s421 = ssub.s32 64, 64
          %422 = vsyncadd %s413, %s421
          %s423 = sadd.s32 %s29, %s28
          %s424 = smul.addr %s423, 64
          %s425 = scalar_lea.hbm %s5, %s424
          %s427 = sshll.u32 %s416, 4
          %s428 = int_to_ptr.vmem [resolvable:$true] %s427
          %430 = dma.vmem_to_hbm [thread:$0]  %s428, 64, %s425, %s413
        $region64: #{encoder_layer.2} parent=39 // pred_fallthru
          _
      $region40: #{encoder_layer.2} parent=5 // pred_fallthru
        _
      %p431 = scmp.le.s32.totalorder 2, %s19
      // Predicated region
      $region65: #{encoder_layer.2} parent=5 // pred_check
        %p432 = pneg %p431
      $region66: #{encoder_layer.2} parent=5 // pred_check_branch
        %434 = sbr.rel (%p432) target = $region68
      $region67: #{encoder_layer.2} parent=5 // pred_region
        %s435 = ssub.s32 %s19, 2
        // Predicated region
        $region69: #{encoder_layer.2} parent=67 // pred_check
          %p436 = pneg %p174
        $region70: #{encoder_layer.2} parent=67 // pred_check_branch
          %438 = sbr.rel (%p436) target = $region72
        $region71: #{encoder_layer.2} parent=67 // pred_region
          %s439 = sand.u32 %s159, 1
          %s440 = scalar_lea.sflag [#allocation4], %s439
          %s441 = sand.u32 %s159, 1
          %s442 = smul.addr %s441, 4
          %s443 = scalar_lea.vmem [#allocation11], %s442
          %444 = dma.done %s440, 64
        $region72: #{encoder_layer.2} parent=67 // pred_fallthru
          _
      $region68: #{encoder_layer.2} parent=5 // pred_fallthru
        _
    $region6: #{encoder_layer.2} parent=1 // loop_footer
      %s23 = sadd.s32 1, %s19
    $region7: #{encoder_layer.2} parent=1 // loop_footer_branch
      %18 = sbr.rel target = $region3
    $region8: #{encoder_layer.2} parent=1 // loop_exit
      _
    %445 = vsyncpa [#allocation3], 1
    %s446 = scalar_lea.sflag [#allocation3], 1
    %447 = vsyncpa %s446, 1
    %448 = vsyncpa [#allocation6], 1
    %449 = vsyncpa [#allocation9], 1
    %450 = vsyncpa [#allocation4], 1
    %s451 = scalar_lea.sflag [#allocation4], 1
    %452 = vsyncpa %s451, 1

// kernel: encoder_layer.3
$region0: #{encoder_layer.3}
  #allocation0 [shape = 'u32[]', space=smem, size = 0x4, offset = 0x4, fixed_abs, tag = 'smem constant byte address 0x4 - core index']
  #allocation1 [shape = 'u32[144,128]{1,0:T(1,128)}', space=vmem, size = 0x12000, scoped, tag = 'internal scratch']
  %s0 = inlined_call_operand.hbm [shape: f32[2,8,32], index: 0, kind: input, shape index: {}]
  %s1 = inlined_call_operand.hbm [shape: bf16[2,8,8], index: 1, kind: input, shape index: {}]
  %s2 = inlined_call_operand.hbm [shape: bf16[2,4,8,8], index: 2, kind: input, shape index: {}]
  %s3 = inlined_call_operand.hbm [shape: bf16[2,4,8,8], index: 3, kind: input, shape index: {}]
  %s4 = inlined_call_operand.hbm [shape: bf16[2,4,8,8], index: 4, kind: input, shape index: {}]
  %s5 = inlined_call_operand.hbm [shape: bf16[4,8,32], index: 5, kind: input, shape index: {}]
  %s6 = inlined_call_operand.hbm [shape: f32[1,32], index: 6, kind: input, shape index: {}]
  %s7 = inlined_call_operand.hbm [shape: f32[1,32], index: 7, kind: input, shape index: {}]
  %s8 = inlined_call_operand.hbm [shape: f32[1,32], index: 8, kind: input, shape index: {}]
  %s9 = inlined_call_operand.hbm [shape: f32[1,32], index: 9, kind: input, shape index: {}]
  %s10 = inlined_call_operand.hbm [shape: f32[1,32], index: 10, kind: input, shape index: {}]
  %s11 = inlined_call_operand.hbm [shape: bf16[32,64], index: 11, kind: input, shape index: {}]
  %s12 = inlined_call_operand.hbm [shape: f32[1,64], index: 12, kind: input, shape index: {}]
  %s13 = inlined_call_operand.hbm [shape: bf16[64,32], index: 13, kind: input, shape index: {}]
  %s14 = inlined_call_operand.hbm [shape: f32[1,32], index: 14, kind: input, shape index: {}]
  %s15 = inlined_call_operand.hbm [shape: f32[2,8,32], index: 15, kind: output, shape index: {}]
  %s16 = sld [smem:[#allocation0]]
  $region153: #{encoder_layer.3} parent=0
    _
  %s18 = ssub.s32 1, %s16
  %s19 = scalar_select 0, %s18, %s16
  $region1: #{encoder_layer.3} parent=0
    #allocation2 [shape = 'u8[8192]{0}', space=vmem, size = 0x2000, scoped, tag = 'input window, operand 0']
    #allocation3 [shape = 's32[2]{0}', space=sflag, size = 0x8, scoped, tag = 'scoped memory for encoder_layer.3']
    #allocation4 [shape = 's32[2]{0}', space=sflag, size = 0x8, scoped, tag = 'scoped memory for encoder_layer.3']
    #allocation5 [shape = 'u8[4096]{0}', space=vmem, size = 0x1000, scoped, tag = 'input window, operand 1']
    #allocation6 [shape = 's32[2]{0}', space=sflag, size = 0x8, scoped, tag = 'scoped memory for encoder_layer.3']
    #allocation7 [shape = 'u8[16384]{0}', space=vmem, size = 0x4000, scoped, tag = 'input window, operand 2']
    #allocation8 [shape = 'u8[16384]{0}', space=vmem, size = 0x4000, scoped, tag = 'input window, operand 3']
    #allocation9 [shape = 's32[2]{0}', space=sflag, size = 0x8, scoped, tag = 'scoped memory for encoder_layer.3']
    #allocation10 [shape = 'u8[16384]{0}', space=vmem, size = 0x4000, scoped, tag = 'input window, operand 4']
    #allocation11 [shape = 'u8[8192]{0}', space=vmem, size = 0x2000, scoped, tag = 'input window, operand 5, single buffered']
    #allocation12 [shape = 's32[1]{0}', space=sflag, size = 0x4, scoped, tag = 'scoped memory for encoder_layer.3']
    #allocation13 [shape = 'u8[512]{0}', space=vmem, size = 0x400, scoped, tag = 'input window, operand 6, single buffered']
    #allocation14 [shape = 'u8[512]{0}', space=vmem, size = 0x400, scoped, tag = 'input window, operand 7, single buffered']
    #allocation15 [shape = 's32[1]{0}', space=sflag, size = 0x4, scoped, tag = 'scoped memory for encoder_layer.3']
    #allocation16 [shape = 'u8[512]{0}', space=vmem, size = 0x400, scoped, tag = 'input window, operand 8, single buffered']
    #allocation17 [shape = 'u8[512]{0}', space=vmem, size = 0x400, scoped, tag = 'input window, operand 9, single buffered']
    #allocation18 [shape = 's32[1]{0}', space=sflag, size = 0x4, scoped, tag = 'scoped memory for encoder_layer.3']
    #allocation19 [shape = 'u8[512]{0}', space=vmem, size = 0x400, scoped, tag = 'input window, operand 10, single buffered']
    #allocation20 [shape = 'u8[8192]{0}', space=vmem, size = 0x2000, scoped, tag = 'input window, operand 11, single buffered']
    #allocation21 [shape = 's32[1]{0}', space=sflag, size = 0x4, scoped, tag = 'scoped memory for encoder_layer.3']
    #allocation22 [shape = 'u8[512]{0}', space=vmem, size = 0x400, scoped, tag = 'input window, operand 12, single buffered']
    #allocation23 [shape = 'u8[16384]{0}', space=vmem, size = 0x4000, scoped, tag = 'input window, operand 13, single buffered']
    #allocation24 [shape = 's32[1]{0}', space=sflag, size = 0x4, scoped, tag = 'scoped memory for encoder_layer.3']
    #allocation25 [shape = 'u8[512]{0}', space=vmem, size = 0x400, scoped, tag = 'input window, operand 14, single buffered']
    #allocation26 [shape = 'u8[8192]{0}', space=vmem, size = 0x2000, scoped, tag = 'output window, operand 0']
    %20 = vsyncpa [#allocation3], 0
    %s21 = scalar_lea.sflag [#allocation3], 1
    %22 = vsyncpa %s21, 0
    %23 = vsyncpa [#allocation6], 0
    %s24 = scalar_lea.sflag [#allocation6], 1
    %25 = vsyncpa %s24, 0
    %26 = vsyncpa [#allocation9], 0
    %s27 = scalar_lea.sflag [#allocation9], 1
    %28 = vsyncpa %s27, 0
    %29 = vsyncpa [#allocation12], 0
    %30 = vsyncpa [#allocation15], 0
    %31 = vsyncpa [#allocation18], 0
    %32 = vsyncpa [#allocation21], 0
    %33 = vsyncpa [#allocation24], 0
    %34 = vsyncpa [#allocation4], 0
    %s35 = scalar_lea.sflag [#allocation4], 1
    %36 = vsyncpa %s35, 0
    loop: start=0, step=1, limit=4
    $region2: #{encoder_layer.3} parent=1 // loop_pre_header
      _
    $region3: #{encoder_layer.3} parent=1 // loop_header
      %s38 = sphi 0, %s42
      %p39 = scmp.ge.s32.totalorder %s38, 4
      %s45 = sphi 0, %s57
      %s46 = sphi 0, %s53
      %s47 = sphi 0, %s45
      %s48 = sphi 0, %s46
      %s49 = sphi 0, %s47
      %s50 = sphi 0, %s48
      %s62 = sphi 0, %s64
      %s65 = sphi 0, %s62
      %s66 = sphi 0, %s65
      %s82 = sphi 0, %s66
      %s90 = sphi 0, %s92
      %s93 = sphi 0, %s90
      %s94 = sphi 0, %s93
      %s110 = sphi 0, %s94
      %s118 = sphi 0, %s120
      %s121 = sphi 0, %s118
      %s122 = sphi 0, %s121
      %s138 = sphi 0, %s122
      %s144 = sphi 0, %s146
      %s147 = sphi 0, %s144
      %s148 = sphi 0, %s147
      %s164 = sphi 0, %s148
      %s170 = sphi 0, %s172
      %s173 = sphi 0, %s170
      %s174 = sphi 0, %s173
      %s190 = sphi 0, %s174
      %s194 = sphi 0, %s194
      %s196 = sphi 0, %s194
      %s197 = sphi 0, %s196
      %s211 = sphi 0, %s197
      %s215 = sphi 0, %s215
      %s217 = sphi 0, %s215
      %s218 = sphi 0, %s217
      %s232 = sphi 0, %s218
      %s236 = sphi 0, %s236
      %s238 = sphi 0, %s236
      %s239 = sphi 0, %s238
      %s253 = sphi 0, %s239
      %s257 = sphi 0, %s257
      %s259 = sphi 0, %s257
      %s260 = sphi 0, %s259
      %s274 = sphi 0, %s260
      %s278 = sphi 0, %s278
      %s280 = sphi 0, %s278
      %s281 = sphi 0, %s280
      %s295 = sphi 0, %s281
      %s299 = sphi 0, %s299
      %s301 = sphi 0, %s299
      %s302 = sphi 0, %s301
      %s316 = sphi 0, %s302
      %s320 = sphi 0, %s320
      %s322 = sphi 0, %s320
      %s323 = sphi 0, %s322
      %s337 = sphi 0, %s323
      %s341 = sphi 0, %s341
      %s343 = sphi 0, %s341
      %s344 = sphi 0, %s343
      %s358 = sphi 0, %s344
      %s362 = sphi 0, %s362
      %s364 = sphi 0, %s362
      %s365 = sphi 0, %s364
      %s379 = sphi 0, %s365
      %s383 = sphi 0, %s383
      %s385 = sphi 0, %s383
      %s386 = sphi 0, %s385
      %s400 = sphi 0, %s386
      %s408 = sphi 0, %s410
      %s411 = sphi 0, %s408
      %s412 = sphi 0, %s411
      %s428 = sphi 0, %s412
    $region4: #{encoder_layer.3} parent=1 // loop_header_branch
      %41 = sbr.rel (%p39) target = $region8
    $region5: #{encoder_layer.3} parent=1 // loop_body
      %s43 = ssub.s32 %s38, 1
      %s44 = ssub.s32 %s38, 2
      %s51 = sadd.s32 1, %s46
      %p52 = scmp.ge.s32.totalorder %s51, 1
      %s53 = scalar_select %p52, 0, %s51
      %s54 = sadd.s32 1, %s45
      %s55 = scalar_select %p52, %s54, %s45
      %p56 = scmp.ge.s32.totalorder %s55, 2
      %s57 = scalar_select %p56, 0, %s55
      %s58 = ssub.s32 %s45, %s57
      %s59 = ssub.s32 %s46, %s53
      %s60 = sor.u32 %s58, %s59
      %p61 = scmp.eq.s32.totalorder %s60, 0
      %s63 = sadd.s32 %s62, 1
      %s64 = scalar_select %p61, %s62, %s63
      %p67 = pneg %p61
      %p68 = scmp.eq.s32.totalorder %s38, 1
      %p69 = por %p67, %p68
      %p70 = scmp.ne.s32.totalorder %s62, %s65
      %p71 = scmp.eq.s32.totalorder %s38, 0
      %p72 = por %p70, %p71
      %p73 = scmp.ne.s32.totalorder %s62, %s65
      %p74 = scmp.eq.s32.totalorder %s43, 1
      %p75 = por %p73, %p74
      %p76 = scmp.ne.s32.totalorder %s65, %s66
      %p77 = scmp.eq.s32.totalorder %s43, 0
      %p78 = por %p76, %p77
      %p79 = scmp.ne.s32.totalorder %s65, %s66
      %p80 = scmp.eq.s32.totalorder %s44, 1
      %p81 = por %p79, %p80
      %p83 = scmp.ne.s32.totalorder %s66, %s82
      %p84 = scmp.eq.s32.totalorder %s44, 0
      %p85 = por %p83, %p84
      %s86 = ssub.s32 %s45, %s57
      %s87 = ssub.s32 %s46, %s53
      %s88 = sor.u32 %s86, %s87
      %p89 = scmp.eq.s32.totalorder %s88, 0
      %s91 = sadd.s32 %s90, 1
      %s92 = scalar_select %p89, %s90, %s91
      %p95 = pneg %p89
      %p96 = scmp.eq.s32.totalorder %s38, 1
      %p97 = por %p95, %p96
      %p98 = scmp.ne.s32.totalorder %s90, %s93
      %p99 = scmp.eq.s32.totalorder %s38, 0
      %p100 = por %p98, %p99
      %p101 = scmp.ne.s32.totalorder %s90, %s93
      %p102 = scmp.eq.s32.totalorder %s43, 1
      %p103 = por %p101, %p102
      %p104 = scmp.ne.s32.totalorder %s93, %s94
      %p105 = scmp.eq.s32.totalorder %s43, 0
      %p106 = por %p104, %p105
      %p107 = scmp.ne.s32.totalorder %s93, %s94
      %p108 = scmp.eq.s32.totalorder %s44, 1
      %p109 = por %p107, %p108
      %p111 = scmp.ne.s32.totalorder %s94, %s110
      %p112 = scmp.eq.s32.totalorder %s44, 0
      %p113 = por %p111, %p112
      %s114 = ssub.s32 %s45, %s57
      %s115 = ssub.s32 %s46, %s53
      %s116 = sor.u32 %s114, %s115
      %p117 = scmp.eq.s32.totalorder %s116, 0
      %s119 = sadd.s32 %s118, 1
      %s120 = scalar_select %p117, %s118, %s119
      %p123 = pneg %p117
      %p124 = scmp.eq.s32.totalorder %s38, 1
      %p125 = por %p123, %p124
      %p126 = scmp.ne.s32.totalorder %s118, %s121
      %p127 = scmp.eq.s32.totalorder %s38, 0
      %p128 = por %p126, %p127
      %p129 = scmp.ne.s32.totalorder %s118, %s121
      %p130 = scmp.eq.s32.totalorder %s43, 1
      %p131 = por %p129, %p130
      %p132 = scmp.ne.s32.totalorder %s121, %s122
      %p133 = scmp.eq.s32.totalorder %s43, 0
      %p134 = por %p132, %p133
      %p135 = scmp.ne.s32.totalorder %s121, %s122
      %p136 = scmp.eq.s32.totalorder %s44, 1
      %p137 = por %p135, %p136
      %p139 = scmp.ne.s32.totalorder %s122, %s138
      %p140 = scmp.eq.s32.totalorder %s44, 0
      %p141 = por %p139, %p140
      %s142 = ssub.s32 %s45, %s57
      %p143 = scmp.eq.s32.totalorder %s142, 0
      %s145 = sadd.s32 %s144, 1
      %s146 = scalar_select %p143, %s144, %s145
      %p149 = pneg %p143
      %p150 = scmp.eq.s32.totalorder %s38, 1
      %p151 = por %p149, %p150
      %p152 = scmp.ne.s32.totalorder %s144, %s147
      %p153 = scmp.eq.s32.totalorder %s38, 0
      %p154 = por %p152, %p153
      %p155 = scmp.ne.s32.totalorder %s144, %s147
      %p156 = scmp.eq.s32.totalorder %s43, 1
      %p157 = por %p155, %p156
      %p158 = scmp.ne.s32.totalorder %s147, %s148
      %p159 = scmp.eq.s32.totalorder %s43, 0
      %p160 = por %p158, %p159
      %p161 = scmp.ne.s32.totalorder %s147, %s148
      %p162 = scmp.eq.s32.totalorder %s44, 1
      %p163 = por %p161, %p162
      %p165 = scmp.ne.s32.totalorder %s148, %s164
      %p166 = scmp.eq.s32.totalorder %s44, 0
      %p167 = por %p165, %p166
      %s168 = ssub.s32 %s45, %s57
      %p169 = scmp.eq.s32.totalorder %s168, 0
      %s171 = sadd.s32 %s170, 1
      %s172 = scalar_select %p169, %s170, %s171
      %p175 = pneg %p169
      %p176 = scmp.eq.s32.totalorder %s38, 1
      %p177 = por %p175, %p176
      %p178 = scmp.ne.s32.totalorder %s170, %s173
      %p179 = scmp.eq.s32.totalorder %s38, 0
      %p180 = por %p178, %p179
      %p181 = scmp.ne.s32.totalorder %s170, %s173
      %p182 = scmp.eq.s32.totalorder %s43, 1
      %p183 = por %p181, %p182
      %p184 = scmp.ne.s32.totalorder %s173, %s174
      %p185 = scmp.eq.s32.totalorder %s43, 0
      %p186 = por %p184, %p185
      %p187 = scmp.ne.s32.totalorder %s173, %s174
      %p188 = scmp.eq.s32.totalorder %s44, 1
      %p189 = por %p187, %p188
      %p191 = scmp.ne.s32.totalorder %s174, %s190
      %p192 = scmp.eq.s32.totalorder %s44, 0
      %p193 = por %p191, %p192
      %s195 = sadd.s32 %s194, 1
      %p198 = scmp.eq.s32.totalorder %s38, 1
      %p199 = scmp.ne.s32.totalorder %s194, %s196
      %p200 = scmp.eq.s32.totalorder %s38, 0
      %p201 = por %p199, %p200
      %p202 = scmp.ne.s32.totalorder %s194, %s196
      %p203 = scmp.eq.s32.totalorder %s43, 1
      %p204 = por %p202, %p203
      %p205 = scmp.ne.s32.totalorder %s196, %s197
      %p206 = scmp.eq.s32.totalorder %s43, 0
      %p207 = por %p205, %p206
      %p208 = scmp.ne.s32.totalorder %s196, %s197
      %p209 = scmp.eq.s32.totalorder %s44, 1
      %p210 = por %p208, %p209
      %p212 = scmp.ne.s32.totalorder %s197, %s211
      %p213 = scmp.eq.s32.totalorder %s44, 0
      %p214 = por %p212, %p213
      %s216 = sadd.s32 %s215, 1
      %p219 = scmp.eq.s32.totalorder %s38, 1
      %p220 = scmp.ne.s32.totalorder %s215, %s217
      %p221 = scmp.eq.s32.totalorder %s38, 0
      %p222 = por %p220, %p221
      %p223 = scmp.ne.s32.totalorder %s215, %s217
      %p224 = scmp.eq.s32.totalorder %s43, 1
      %p225 = por %p223, %p224
      %p226 = scmp.ne.s32.totalorder %s217, %s218
      %p227 = scmp.eq.s32.totalorder %s43, 0
      %p228 = por %p226, %p227
      %p229 = scmp.ne.s32.totalorder %s217, %s218
      %p230 = scmp.eq.s32.totalorder %s44, 1
      %p231 = por %p229, %p230
      %p233 = scmp.ne.s32.totalorder %s218, %s232
      %p234 = scmp.eq.s32.totalorder %s44, 0
      %p235 = por %p233, %p234
      %s237 = sadd.s32 %s236, 1
      %p240 = scmp.eq.s32.totalorder %s38, 1
      %p241 = scmp.ne.s32.totalorder %s236, %s238
      %p242 = scmp.eq.s32.totalorder %s38, 0
      %p243 = por %p241, %p242
      %p244 = scmp.ne.s32.totalorder %s236, %s238
      %p245 = scmp.eq.s32.totalorder %s43, 1
      %p246 = por %p244, %p245
      %p247 = scmp.ne.s32.totalorder %s238, %s239
      %p248 = scmp.eq.s32.totalorder %s43, 0
      %p249 = por %p247, %p248
      %p250 = scmp.ne.s32.totalorder %s238, %s239
      %p251 = scmp.eq.s32.totalorder %s44, 1
      %p252 = por %p250, %p251
      %p254 = scmp.ne.s32.totalorder %s239, %s253
      %p255 = scmp.eq.s32.totalorder %s44, 0
      %p256 = por %p254, %p255
      %s258 = sadd.s32 %s257, 1
      %p261 = scmp.eq.s32.totalorder %s38, 1
      %p262 = scmp.ne.s32.totalorder %s257, %s259
      %p263 = scmp.eq.s32.totalorder %s38, 0
      %p264 = por %p262, %p263
      %p265 = scmp.ne.s32.totalorder %s257, %s259
      %p266 = scmp.eq.s32.totalorder %s43, 1
      %p267 = por %p265, %p266
      %p268 = scmp.ne.s32.totalorder %s259, %s260
      %p269 = scmp.eq.s32.totalorder %s43, 0
      %p270 = por %p268, %p269
      %p271 = scmp.ne.s32.totalorder %s259, %s260
      %p272 = scmp.eq.s32.totalorder %s44, 1
      %p273 = por %p271, %p272
      %p275 = scmp.ne.s32.totalorder %s260, %s274
      %p276 = scmp.eq.s32.totalorder %s44, 0
      %p277 = por %p275, %p276
      %s279 = sadd.s32 %s278, 1
      %p282 = scmp.eq.s32.totalorder %s38, 1
      %p283 = scmp.ne.s32.totalorder %s278, %s280
      %p284 = scmp.eq.s32.totalorder %s38, 0
      %p285 = por %p283, %p284
      %p286 = scmp.ne.s32.totalorder %s278, %s280
      %p287 = scmp.eq.s32.totalorder %s43, 1
      %p288 = por %p286, %p287
      %p289 = scmp.ne.s32.totalorder %s280, %s281
      %p290 = scmp.eq.s32.totalorder %s43, 0
      %p291 = por %p289, %p290
      %p292 = scmp.ne.s32.totalorder %s280, %s281
      %p293 = scmp.eq.s32.totalorder %s44, 1
      %p294 = por %p292, %p293
      %p296 = scmp.ne.s32.totalorder %s281, %s295
      %p297 = scmp.eq.s32.totalorder %s44, 0
      %p298 = por %p296, %p297
      %s300 = sadd.s32 %s299, 1
      %p303 = scmp.eq.s32.totalorder %s38, 1
      %p304 = scmp.ne.s32.totalorder %s299, %s301
      %p305 = scmp.eq.s32.totalorder %s38, 0
      %p306 = por %p304, %p305
      %p307 = scmp.ne.s32.totalorder %s299, %s301
      %p308 = scmp.eq.s32.totalorder %s43, 1
      %p309 = por %p307, %p308
      %p310 = scmp.ne.s32.totalorder %s301, %s302
      %p311 = scmp.eq.s32.totalorder %s43, 0
      %p312 = por %p310, %p311
      %p313 = scmp.ne.s32.totalorder %s301, %s302
      %p314 = scmp.eq.s32.totalorder %s44, 1
      %p315 = por %p313, %p314
      %p317 = scmp.ne.s32.totalorder %s302, %s316
      %p318 = scmp.eq.s32.totalorder %s44, 0
      %p319 = por %p317, %p318
      %s321 = sadd.s32 %s320, 1
      %p324 = scmp.eq.s32.totalorder %s38, 1
      %p325 = scmp.ne.s32.totalorder %s320, %s322
      %p326 = scmp.eq.s32.totalorder %s38, 0
      %p327 = por %p325, %p326
      %p328 = scmp.ne.s32.totalorder %s320, %s322
      %p329 = scmp.eq.s32.totalorder %s43, 1
      %p330 = por %p328, %p329
      %p331 = scmp.ne.s32.totalorder %s322, %s323
      %p332 = scmp.eq.s32.totalorder %s43, 0
      %p333 = por %p331, %p332
      %p334 = scmp.ne.s32.totalorder %s322, %s323
      %p335 = scmp.eq.s32.totalorder %s44, 1
      %p336 = por %p334, %p335
      %p338 = scmp.ne.s32.totalorder %s323, %s337
      %p339 = scmp.eq.s32.totalorder %s44, 0
      %p340 = por %p338, %p339
      %s342 = sadd.s32 %s341, 1
      %p345 = scmp.eq.s32.totalorder %s38, 1
      %p346 = scmp.ne.s32.totalorder %s341, %s343
      %p347 = scmp.eq.s32.totalorder %s38, 0
      %p348 = por %p346, %p347
      %p349 = scmp.ne.s32.totalorder %s341, %s343
      %p350 = scmp.eq.s32.totalorder %s43, 1
      %p351 = por %p349, %p350
      %p352 = scmp.ne.s32.totalorder %s343, %s344
      %p353 = scmp.eq.s32.totalorder %s43, 0
      %p354 = por %p352, %p353
      %p355 = scmp.ne.s32.totalorder %s343, %s344
      %p356 = scmp.eq.s32.totalorder %s44, 1
      %p357 = por %p355, %p356
      %p359 = scmp.ne.s32.totalorder %s344, %s358
      %p360 = scmp.eq.s32.totalorder %s44, 0
      %p361 = por %p359, %p360
      %s363 = sadd.s32 %s362, 1
      %p366 = scmp.eq.s32.totalorder %s38, 1
      %p367 = scmp.ne.s32.totalorder %s362, %s364
      %p368 = scmp.eq.s32.totalorder %s38, 0
      %p369 = por %p367, %p368
      %p370 = scmp.ne.s32.totalorder %s362, %s364
      %p371 = scmp.eq.s32.totalorder %s43, 1
      %p372 = por %p370, %p371
      %p373 = scmp.ne.s32.totalorder %s364, %s365
      %p374 = scmp.eq.s32.totalorder %s43, 0
      %p375 = por %p373, %p374
      %p376 = scmp.ne.s32.totalorder %s364, %s365
      %p377 = scmp.eq.s32.totalorder %s44, 1
      %p378 = por %p376, %p377
      %p380 = scmp.ne.s32.totalorder %s365, %s379
      %p381 = scmp.eq.s32.totalorder %s44, 0
      %p382 = por %p380, %p381
      %s384 = sadd.s32 %s383, 1
      %p387 = scmp.eq.s32.totalorder %s38, 1
      %p388 = scmp.ne.s32.totalorder %s383, %s385
      %p389 = scmp.eq.s32.totalorder %s38, 0
      %p390 = por %p388, %p389
      %p391 = scmp.ne.s32.totalorder %s383, %s385
      %p392 = scmp.eq.s32.totalorder %s43, 1
      %p393 = por %p391, %p392
      %p394 = scmp.ne.s32.totalorder %s385, %s386
      %p395 = scmp.eq.s32.totalorder %s43, 0
      %p396 = por %p394, %p395
      %p397 = scmp.ne.s32.totalorder %s385, %s386
      %p398 = scmp.eq.s32.totalorder %s44, 1
      %p399 = por %p397, %p398
      %p401 = scmp.ne.s32.totalorder %s386, %s400
      %p402 = scmp.eq.s32.totalorder %s44, 0
      %p403 = por %p401, %p402
      %s404 = ssub.s32 %s45, %s57
      %s405 = ssub.s32 %s46, %s53
      %s406 = sor.u32 %s404, %s405
      %p407 = scmp.eq.s32.totalorder %s406, 0
      %s409 = sadd.s32 %s408, 1
      %s410 = scalar_select %p407, %s408, %s409
      %p413 = pneg %p407
      %p414 = scmp.eq.s32.totalorder %s38, 1
      %p415 = por %p413, %p414
      %p416 = scmp.ne.s32.totalorder %s408, %s411
      %p417 = scmp.eq.s32.totalorder %s38, 0
      %p418 = por %p416, %p417
      %p419 = scmp.ne.s32.totalorder %s408, %s411
      %p420 = scmp.eq.s32.totalorder %s43, 1
      %p421 = por %p419, %p420
      %p422 = scmp.ne.s32.totalorder %s411, %s412
      %p423 = scmp.eq.s32.totalorder %s43, 0
      %p424 = por %p422, %p423
      %p425 = scmp.ne.s32.totalorder %s411, %s412
      %p426 = scmp.eq.s32.totalorder %s44, 1
      %p427 = por %p425, %p426
      %p429 = scmp.ne.s32.totalorder %s412, %s428
      %p430 = scmp.eq.s32.totalorder %s44, 0
      %p431 = por %p429, %p430
      %p432 = scmp.le.s32.totalorder 1, %s38
      %p433 = scmp.lt.s32.totalorder %s38, 3
      %p434 = pnand %p432, %p433
      %p435 = pneg %p434
      // Predicated region
      $region9: #{encoder_layer.3} parent=5 // pred_check
        _
      $region10: #{encoder_layer.3} parent=5 // pred_check_branch
        %437 = sbr.rel (%p434) target = $region12
      $region11: #{encoder_layer.3} parent=5 // pred_region
        %s438 = ssub.s32 %s38, 1
        // Predicated region
        $region13: #{encoder_layer.3} parent=11 // pred_check
          %p439 = pneg %p207
        $region14: #{encoder_layer.3} parent=11 // pred_check_branch
          %441 = sbr.rel (%p439) target = $region16
        $region15: #{encoder_layer.3} parent=11 // pred_region
          %s443 = ssub.s32 256, 256
          %444 = vsyncadd [#allocation12], %s443
          %s445 = sshll.u32 [#allocation11], 4
          %s446 = int_to_ptr.vmem [resolvable:$true] %s445
          %451 = dma.hbm_to_vmem [thread:$0]  %s5, 256, %s446, [#allocation12], 64, 64, 4
        $region16: #{encoder_layer.3} parent=11 // pred_fallthru
          _
        // Predicated region
        $region17: #{encoder_layer.3} parent=11 // pred_check
          %p452 = pneg %p228
        $region18: #{encoder_layer.3} parent=11 // pred_check_branch
          %454 = sbr.rel (%p452) target = $region20
        $region19: #{encoder_layer.3} parent=11 // pred_region
          %s456 = ssub.s32 16, 16
          %457 = vsyncadd [#allocation12], %s456
          %s459 = sshll.u32 [#allocation13], 4
          %s460 = int_to_ptr.vmem [resolvable:$true] %s459
          %462 = dma.hbm_to_vmem [thread:$0]  %s6, 16, %s460, [#allocation12]
        $region20: #{encoder_layer.3} parent=11 // pred_fallthru
          _
        // Predicated region
        $region21: #{encoder_layer.3} parent=11 // pred_check
          %p463 = pneg %p249
        $region22: #{encoder_layer.3} parent=11 // pred_check_branch
          %465 = sbr.rel (%p463) target = $region24
        $region23: #{encoder_layer.3} parent=11 // pred_region
          %s467 = ssub.s32 16, 16
          %468 = vsyncadd [#allocation15], %s467
          %s470 = sshll.u32 [#allocation14], 4
          %s471 = int_to_ptr.vmem [resolvable:$true] %s470
          %473 = dma.hbm_to_vmem [thread:$0]  %s7, 16, %s471, [#allocation15]
        $region24: #{encoder_layer.3} parent=11 // pred_fallthru
          _
        // Predicated region
        $region25: #{encoder_layer.3} parent=11 // pred_check
          %p474 = pneg %p270
        $region26: #{encoder_layer.3} parent=11 // pred_check_branch
          %476 = sbr.rel (%p474) target = $region28
        $region27: #{encoder_layer.3} parent=11 // pred_region
          %s478 = ssub.s32 16, 16
          %479 = vsyncadd [#allocation15], %s478
          %s481 = sshll.u32 [#allocation16], 4
          %s482 = int_to_ptr.vmem [resolvable:$true] %s481
          %484 = dma.hbm_to_vmem [thread:$0]  %s8, 16, %s482, [#allocation15]
        $region28: #{encoder_layer.3} parent=11 // pred_fallthru
          _
        // Predicated region
        $region29: #{encoder_layer.3} parent=11 // pred_check
          %p485 = pneg %p291
        $region30: #{encoder_layer.3} parent=11 // pred_check_branch
          %487 = sbr.rel (%p485) target = $region32
        $region31: #{encoder_layer.3} parent=11 // pred_region
          %s489 = ssub.s32 16, 16
          %490 = vsyncadd [#allocation18], %s489
          %s492 = sshll.u32 [#allocation17], 4
          %s493 = int_to_ptr.vmem [resolvable:$true] %s492
          %495 = dma.hbm_to_vmem [thread:$0]  %s9, 16, %s493, [#allocation18]
        $region32: #{encoder_layer.3} parent=11 // pred_fallthru
          _
        // Predicated region
        $region33: #{encoder_layer.3} parent=11 // pred_check
          %p496 = pneg %p312
        $region34: #{encoder_layer.3} parent=11 // pred_check_branch
          %498 = sbr.rel (%p496) target = $region36
        $region35: #{encoder_layer.3} parent=11 // pred_region
          %s500 = ssub.s32 16, 16
          %501 = vsyncadd [#allocation18], %s500
          %s503 = sshll.u32 [#allocation19], 4
          %s504 = int_to_ptr.vmem [resolvable:$true] %s503
          %506 = dma.hbm_to_vmem [thread:$0]  %s10, 16, %s504, [#allocation18]
        $region36: #{encoder_layer.3} parent=11 // pred_fallthru
          _
        // Predicated region
        $region37: #{encoder_layer.3} parent=11 // pred_check
          %p507 = pneg %p333
        $region38: #{encoder_layer.3} parent=11 // pred_check_branch
          %509 = sbr.rel (%p507) target = $region40
        $region39: #{encoder_layer.3} parent=11 // pred_region
          %s511 = ssub.s32 256, 256
          %512 = vsyncadd [#allocation21], %s511
          %s513 = sshll.u32 [#allocation20], 4
          %s514 = int_to_ptr.vmem [resolvable:$true] %s513
          %519 = dma.hbm_to_vmem [thread:$0]  %s11, 256, %s514, [#allocation21], 64, 64, 4
        $region40: #{encoder_layer.3} parent=11 // pred_fallthru
          _
        // Predicated region
        $region41: #{encoder_layer.3} parent=11 // pred_check
          %p520 = pneg %p354
        $region42: #{encoder_layer.3} parent=11 // pred_check_branch
          %522 = sbr.rel (%p520) target = $region44
        $region43: #{encoder_layer.3} parent=11 // pred_region
          %s524 = ssub.s32 16, 16
          %525 = vsyncadd [#allocation21], %s524
          %s527 = sshll.u32 [#allocation22], 4
          %s528 = int_to_ptr.vmem [resolvable:$true] %s527
          %530 = dma.hbm_to_vmem [thread:$0]  %s12, 16, %s528, [#allocation21]
        $region44: #{encoder_layer.3} parent=11 // pred_fallthru
          _
        // Predicated region
        $region45: #{encoder_layer.3} parent=11 // pred_check
          %p531 = pneg %p375
        $region46: #{encoder_layer.3} parent=11 // pred_check_branch
          %533 = sbr.rel (%p531) target = $region48
        $region47: #{encoder_layer.3} parent=11 // pred_region
          %s535 = ssub.s32 512, 512
          %536 = vsyncadd [#allocation24], %s535
          %s537 = sshll.u32 [#allocation23], 4
          %s538 = int_to_ptr.vmem [resolvable:$true] %s537
          %543 = dma.hbm_to_vmem [thread:$0]  %s13, 512, %s538, [#allocation24], 64, 64, 4
        $region48: #{encoder_layer.3} parent=11 // pred_fallthru
          _
        // Predicated region
        $region49: #{encoder_layer.3} parent=11 // pred_check
          %p544 = pneg %p396
        $region50: #{encoder_layer.3} parent=11 // pred_check_branch
          %546 = sbr.rel (%p544) target = $region52
        $region51: #{encoder_layer.3} parent=11 // pred_region
          %s548 = ssub.s32 16, 16
          %549 = vsyncadd [#allocation24], %s548
          %s551 = sshll.u32 [#allocation25], 4
          %s552 = int_to_ptr.vmem [resolvable:$true] %s551
          %554 = dma.hbm_to_vmem [thread:$0]  %s14, 16, %s552, [#allocation24]
        $region52: #{encoder_layer.3} parent=11 // pred_fallthru
          _
      $region12: #{encoder_layer.3} parent=5 // pred_fallthru
        _
      %p555 = scmp.lt.s32.totalorder %s38, 2
      // Predicated region
      $region53: #{encoder_layer.3} parent=5 // pred_check
        %p556 = pneg %p555
      $region54: #{encoder_layer.3} parent=5 // pred_check_branch
        %558 = sbr.rel (%p556) target = $region56
      $region55: #{encoder_layer.3} parent=5 // pred_region
        // Predicated region
        $region57: #{encoder_layer.3} parent=55 // pred_check
          %p559 = pneg %p72
        $region58: #{encoder_layer.3} parent=55 // pred_check_branch
          %561 = sbr.rel (%p559) target = $region60
        $region59: #{encoder_layer.3} parent=55 // pred_region
          %s562 = sand.u32 %s62, 1
          %s563 = scalar_lea.sflag [#allocation3], %s562
          %s564 = sand.u32 %s62, 1
          %s565 = smul.addr %s564, 8
          %s566 = scalar_lea.vmem [#allocation2], %s565
          %s568 = ssub.s32 128, 128
          %569 = vsyncadd %s563, %s568
          %s570 = sadd.s32 %s46, %s45
          %s571 = smul.addr %s570, 128
          %s572 = scalar_lea.hbm %s0, %s571
          %s574 = sshll.u32 %s566, 4
          %s575 = int_to_ptr.vmem [resolvable:$true] %s574
          %577 = dma.hbm_to_vmem [thread:$0]  %s572, 128, %s575, %s563
        $region60: #{encoder_layer.3} parent=55 // pred_fallthru
          _
        // Predicated region
        $region61: #{encoder_layer.3} parent=55 // pred_check
          %p578 = pneg %p100
        $region62: #{encoder_layer.3} parent=55 // pred_check_branch
          %580 = sbr.rel (%p578) target = $region64
        $region63: #{encoder_layer.3} parent=55 // pred_region
          %s581 = sand.u32 %s38, 1
          %s582 = scalar_lea.sflag [#allocation6], %s581
          %s583 = sand.u32 %s90, 1
          %s584 = smul.addr %s583, 4
          %s585 = scalar_lea.vmem [#allocation5], %s584
          %s587 = ssub.s32 64, 64
          %588 = vsyncadd %s582, %s587
          %s589 = sadd.s32 %s46, %s45
          %s590 = smul.addr %s589, 64
          %s591 = scalar_lea.hbm %s1, %s590
          %s593 = sshll.u32 %s585, 4
          %s594 = int_to_ptr.vmem [resolvable:$true] %s593
          %596 = dma.hbm_to_vmem [thread:$0]  %s591, 64, %s594, %s582
        $region64: #{encoder_layer.3} parent=55 // pred_fallthru
          _
        // Predicated region
        $region65: #{encoder_layer.3} parent=55 // pred_check
          %p597 = pneg %p128
        $region66: #{encoder_layer.3} parent=55 // pred_check_branch
          %599 = sbr.rel (%p597) target = $region68
        $region67: #{encoder_layer.3} parent=55 // pred_region
          %s600 = sand.u32 %s38, 1
          %s601 = scalar_lea.sflag [#allocation6], %s600
          %s602 = sand.u32 %s118, 1
          %s603 = smul.addr %s602, 16
          %s604 = scalar_lea.vmem [#allocation7], %s603
          %s606 = ssub.s32 256, 256
          %607 = vsyncadd %s601, %s606
          %s608 = smul.addr %s45, 4
          %s609 = sadd.s32 %s46, %s608
          %s610 = smul.addr %s609, 64
          %s611 = scalar_lea.hbm %s2, %s610
          %s612 = sshll.u32 %s604, 4
          %s613 = int_to_ptr.vmem [resolvable:$true] %s612
          %618 = dma.hbm_to_vmem [thread:$0]  %s611, 256, %s613, %s601, 64, 64, 4
        $region68: #{encoder_layer.3} parent=55 // pred_fallthru
          _
        // Predicated region
        $region69: #{encoder_layer.3} parent=55 // pred_check
          %p619 = pneg %p154
        $region70: #{encoder_layer.3} parent=55 // pred_check_branch
          %621 = sbr.rel (%p619) target = $region72
        $region71: #{encoder_layer.3} parent=55 // pred_region
          %s622 = sand.u32 %s38, 1
          %s623 = scalar_lea.sflag [#allocation9], %s622
          %s624 = sand.u32 %s144, 1
          %s625 = smul.addr %s624, 16
          %s626 = scalar_lea.vmem [#allocation8], %s625
          %s628 = ssub.s32 256, 256
          %629 = vsyncadd %s623, %s628
          %s630 = smul.addr %s45, 4
          %s631 = smul.addr %s630, 64
          %s632 = scalar_lea.hbm %s3, %s631
          %s633 = sshll.u32 %s626, 4
          %s634 = int_to_ptr.vmem [resolvable:$true] %s633
          %639 = dma.hbm_to_vmem [thread:$0]  %s632, 256, %s634, %s623, 64, 64, 4
        $region72: #{encoder_layer.3} parent=55 // pred_fallthru
          _
        // Predicated region
        $region73: #{encoder_layer.3} parent=55 // pred_check
          %p640 = pneg %p180
        $region74: #{encoder_layer.3} parent=55 // pred_check_branch
          %642 = sbr.rel (%p640) target = $region76
        $region75: #{encoder_layer.3} parent=55 // pred_region
          %s643 = sand.u32 %s38, 1
          %s644 = scalar_lea.sflag [#allocation9], %s643
          %s645 = sand.u32 %s170, 1
          %s646 = smul.addr %s645, 16
          %s647 = scalar_lea.vmem [#allocation10], %s646
          %s649 = ssub.s32 256, 256
          %650 = vsyncadd %s644, %s649
          %s651 = smul.addr %s45, 4
          %s652 = smul.addr %s651, 64
          %s653 = scalar_lea.hbm %s4, %s652
          %s654 = sshll.u32 %s647, 4
          %s655 = int_to_ptr.vmem [resolvable:$true] %s654
          %660 = dma.hbm_to_vmem [thread:$0]  %s653, 256, %s655, %s644, 64, 64, 4
        $region76: #{encoder_layer.3} parent=55 // pred_fallthru
          _
      $region56: #{encoder_layer.3} parent=5 // pred_fallthru
        _
      %p661 = scmp.le.s32.totalorder 1, %s38
      %p662 = scmp.lt.s32.totalorder %s38, 3
      %p663 = pnand %p661, %p662
      %p664 = pneg %p663
      // Predicated region
      $region77: #{encoder_layer.3} parent=5 // pred_check
        _
      $region78: #{encoder_layer.3} parent=5 // pred_check_branch
        %666 = sbr.rel (%p663) target = $region80
      $region79: #{encoder_layer.3} parent=5 // pred_region
        %s667 = ssub.s32 %s38, 1
        %s668 = sand.u32 %s65, 1
        %s669 = scalar_lea.sflag [#allocation3], %s668
        %s670 = sand.u32 %s65, 1
        %s671 = smul.addr %s670, 8
        %s672 = scalar_lea.vmem [#allocation2], %s671
        // Predicated region
        $region81: #{encoder_layer.3} parent=79 // pred_check
          %p673 = pneg %p78
        $region82: #{encoder_layer.3} parent=79 // pred_check_branch
          %675 = sbr.rel (%p673) target = $region84
        $region83: #{encoder_layer.3} parent=79 // pred_region
          %676 = dma.done %s669, 128
        $region84: #{encoder_layer.3} parent=79 // pred_fallthru
          _
        %s677 = sand.u32 %s43, 1
        %s678 = scalar_lea.sflag [#allocation6], %s677
        %s679 = sand.u32 %s93, 1
        %s680 = smul.addr %s679, 4
        %s681 = scalar_lea.vmem [#allocation5], %s680
        // Predicated region
        $region85: #{encoder_layer.3} parent=79 // pred_check
          %p682 = pneg %p106
        $region86: #{encoder_layer.3} parent=79 // pred_check_branch
          %684 = sbr.rel (%p682) target = $region88
        $region87: #{encoder_layer.3} parent=79 // pred_region
          %685 = dma.done %s678, 64
        $region88: #{encoder_layer.3} parent=79 // pred_fallthru
          _
        %s686 = sand.u32 %s43, 1
        %s687 = scalar_lea.sflag [#allocation6], %s686
        %s688 = sand.u32 %s121, 1
        %s689 = smul.addr %s688, 16
        %s690 = scalar_lea.vmem [#allocation7], %s689
        // Predicated region
        $region89: #{encoder_layer.3} parent=79 // pred_check
          %p691 = pneg %p134
        $region90: #{encoder_layer.3} parent=79 // pred_check_branch
          %693 = sbr.rel (%p691) target = $region92
        $region91: #{encoder_layer.3} parent=79 // pred_region
          %694 = dma.done %s687, 256
        $region92: #{encoder_layer.3} parent=79 // pred_fallthru
          _
        %s695 = sand.u32 %s43, 1
        %s696 = scalar_lea.sflag [#allocation9], %s695
        %s697 = sand.u32 %s147, 1
        %s698 = smul.addr %s697, 16
        %s699 = scalar_lea.vmem [#allocation8], %s698
        // Predicated region
        $region93: #{encoder_layer.3} parent=79 // pred_check
          %p700 = pneg %p160
        $region94: #{encoder_layer.3} parent=79 // pred_check_branch
          %702 = sbr.rel (%p700) target = $region96
        $region95: #{encoder_layer.3} parent=79 // pred_region
          %703 = dma.done %s696, 256
        $region96: #{encoder_layer.3} parent=79 // pred_fallthru
          _
        %s704 = sand.u32 %s43, 1
        %s705 = scalar_lea.sflag [#allocation9], %s704
        %s706 = sand.u32 %s173, 1
        %s707 = smul.addr %s706, 16
        %s708 = scalar_lea.vmem [#allocation10], %s707
        // Predicated region
        $region97: #{encoder_layer.3} parent=79 // pred_check
          %p709 = pneg %p186
        $region98: #{encoder_layer.3} parent=79 // pred_check_branch
          %711 = sbr.rel (%p709) target = $region100
        $region99: #{encoder_layer.3} parent=79 // pred_region
          %712 = dma.done %s705, 256
        $region100: #{encoder_layer.3} parent=79 // pred_fallthru
          _
        // Predicated region
        $region101: #{encoder_layer.3} parent=79 // pred_check
          %p713 = pneg %p207
        $region102: #{encoder_layer.3} parent=79 // pred_check_branch
          %715 = sbr.rel (%p713) target = $region104
        $region103: #{encoder_layer.3} parent=79 // pred_region
          %716 = dma.done [#allocation12], 256
        $region104: #{encoder_layer.3} parent=79 // pred_fallthru
          _
        // Predicated region
        $region105: #{encoder_layer.3} parent=79 // pred_check
          %p717 = pneg %p228
        $region106: #{encoder_layer.3} parent=79 // pred_check_branch
          %719 = sbr.rel (%p717) target = $region108
        $region107: #{encoder_layer.3} parent=79 // pred_region
          %720 = dma.done [#allocation12], 16
        $region108: #{encoder_layer.3} parent=79 // pred_fallthru
          _
        // Predicated region
        $region109: #{encoder_layer.3} parent=79 // pred_check
          %p721 = pneg %p249
        $region110: #{encoder_layer.3} parent=79 // pred_check_branch
          %723 = sbr.rel (%p721) target = $region112
        $region111: #{encoder_layer.3} parent=79 // pred_region
          %724 = dma.done [#allocation15], 16
        $region112: #{encoder_layer.3} parent=79 // pred_fallthru
          _
        // Predicated region
        $region113: #{encoder_layer.3} parent=79 // pred_check
          %p725 = pneg %p270
        $region114: #{encoder_layer.3} parent=79 // pred_check_branch
          %727 = sbr.rel (%p725) target = $region116
        $region115: #{encoder_layer.3} parent=79 // pred_region
          %728 = dma.done [#allocation15], 16
        $region116: #{encoder_layer.3} parent=79 // pred_fallthru
          _
        // Predicated region
        $region117: #{encoder_layer.3} parent=79 // pred_check
          %p729 = pneg %p291
        $region118: #{encoder_layer.3} parent=79 // pred_check_branch
          %731 = sbr.rel (%p729) target = $region120
        $region119: #{encoder_layer.3} parent=79 // pred_region
          %732 = dma.done [#allocation18], 16
        $region120: #{encoder_layer.3} parent=79 // pred_fallthru
          _
        // Predicated region
        $region121: #{encoder_layer.3} parent=79 // pred_check
          %p733 = pneg %p312
        $region122: #{encoder_layer.3} parent=79 // pred_check_branch
          %735 = sbr.rel (%p733) target = $region124
        $region123: #{encoder_layer.3} parent=79 // pred_region
          %736 = dma.done [#allocation18], 16
        $region124: #{encoder_layer.3} parent=79 // pred_fallthru
          _
        // Predicated region
        $region125: #{encoder_layer.3} parent=79 // pred_check
          %p737 = pneg %p333
        $region126: #{encoder_layer.3} parent=79 // pred_check_branch
          %739 = sbr.rel (%p737) target = $region128
        $region127: #{encoder_layer.3} parent=79 // pred_region
          %740 = dma.done [#allocation21], 256
        $region128: #{encoder_layer.3} parent=79 // pred_fallthru
          _
        // Predicated region
        $region129: #{encoder_layer.3} parent=79 // pred_check
          %p741 = pneg %p354
        $region130: #{encoder_layer.3} parent=79 // pred_check_branch
          %743 = sbr.rel (%p741) target = $region132
        $region131: #{encoder_layer.3} parent=79 // pred_region
          %744 = dma.done [#allocation21], 16
        $region132: #{encoder_layer.3} parent=79 // pred_fallthru
          _
        // Predicated region
        $region133: #{encoder_layer.3} parent=79 // pred_check
          %p745 = pneg %p375
        $region134: #{encoder_layer.3} parent=79 // pred_check_branch
          %747 = sbr.rel (%p745) target = $region136
        $region135: #{encoder_layer.3} parent=79 // pred_region
          %748 = dma.done [#allocation24], 512
        $region136: #{encoder_layer.3} parent=79 // pred_fallthru
          _
        // Predicated region
        $region137: #{encoder_layer.3} parent=79 // pred_check
          %p749 = pneg %p396
        $region138: #{encoder_layer.3} parent=79 // pred_check_branch
          %751 = sbr.rel (%p749) target = $region140
        $region139: #{encoder_layer.3} parent=79 // pred_region
          %752 = dma.done [#allocation24], 16
        $region140: #{encoder_layer.3} parent=79 // pred_fallthru
          _
        %s753 = sand.u32 %s65, 1
        %s754 = scalar_lea.sflag [#allocation3], %s753
        %s755 = sand.u32 %s65, 1
        %s756 = smul.addr %s755, 8
        %s757 = scalar_lea.vmem [#allocation2], %s756
        %p758 = pneg %p78
        %p759 = pneg %p75
        %s760 = sand.u32 %s43, 1
        %s761 = scalar_lea.sflag [#allocation6], %s760
        %s762 = sand.u32 %s93, 1
        %s763 = smul.addr %s762, 4
        %s764 = scalar_lea.vmem [#allocation5], %s763
        %p765 = pneg %p106
        %p766 = pneg %p103
        %s767 = sand.u32 %s43, 1
        %s768 = scalar_lea.sflag [#allocation6], %s767
        %s769 = sand.u32 %s121, 1
        %s770 = smul.addr %s769, 16
        %s771 = scalar_lea.vmem [#allocation7], %s770
        %p772 = pneg %p134
        %p773 = pneg %p131
        %s774 = sand.u32 %s43, 1
        %s775 = scalar_lea.sflag [#allocation9], %s774
        %s776 = sand.u32 %s147, 1
        %s777 = smul.addr %s776, 16
        %s778 = scalar_lea.vmem [#allocation8], %s777
        %p779 = pneg %p160
        %p780 = pneg %p157
        %s781 = sand.u32 %s43, 1
        %s782 = scalar_lea.sflag [#allocation9], %s781
        %s783 = sand.u32 %s173, 1
        %s784 = smul.addr %s783, 16
        %s785 = scalar_lea.vmem [#allocation10], %s784
        %p786 = pneg %p186
        %p787 = pneg %p183
        %p788 = pneg %p207
        %p789 = pneg %p204
        %p790 = pneg %p228
        %p791 = pneg %p225
        %p792 = pneg %p249
        %p793 = pneg %p246
        %p794 = pneg %p270
        %p795 = pneg %p267
        %p796 = pneg %p291
        %p797 = pneg %p288
        %p798 = pneg %p312
        %p799 = pneg %p309
        %p800 = pneg %p333
        %p801 = pneg %p330
        %p802 = pneg %p354
        %p803 = pneg %p351
        %p804 = pneg %p375
        %p805 = pneg %p372
        %p806 = pneg %p396
        %p807 = pneg %p393
        %p808 = pneg %p424
        %p809 = pneg %p421
        %s810 = sand.u32 %s411, 1
        %s811 = scalar_lea.sflag [#allocation4], %s810
        %s812 = sand.u32 %s411, 1
        %s813 = smul.addr %s812, 8
        %s814 = scalar_lea.vmem [#allocation26], %s813
        %v816 = vld [vmem:[%s672] sm:$0xff]
        %v817 = vld [vmem:[%s690] sm:$0xf]
        %v818 = vld [vmem:[%s690 + $0x4] sm:$0xf]
        %v819 = vld [vmem:[%s690 + $0x8] sm:$0xf]
        %v820 = vld [vmem:[%s690 + $0xc] sm:$0xf]
        %v821 = vld [vmem:[%s699] sm:$0xf]
        %v822 = vld [vmem:[%s699 + $0x4] sm:$0xf]
        %v823 = vld [vmem:[%s699 + $0x8] sm:$0xf]
        %v824 = vld [vmem:[%s699 + $0xc] sm:$0xf]
        %v825 = vld [vmem:[%s708] sm:$0xf]
        %v826 = vld [vmem:[%s708 + $0x4] sm:$0xf]
        %v827 = vld [vmem:[%s708 + $0x8] sm:$0xf]
        %v828 = vld [vmem:[%s708 + $0xc] sm:$0xf]
        %v829 = vld [vmem:[%s681] sm:$0xf]
        %v830 = vunpack.c.l.bf16 %v829
        %vm831 = vcmask 64512
        %v833 = vsel %vm831, %v817, 0
        %v836 = vsel %vm831, %v821, 0
        %838 = vmatprep.subr.bf16.mxu0 0
        %839 = vmatpush1.bf16.xpose.msra.mxu0 %v836
        %840 = vmatprep.subr.bf16.mxu0 0
        %841 = vmatpush1.bf16.xpose.msra.mxu0 0
        %842 = vmatprep.subr.bf16.mxu0 0
        %843 = vmatpush1.bf16.xpose.msra.mxu0 0
        %844 = vmatprep.subr.bf16.mxu0 0
        %845 = vmatpush1.bf16.xpose.msra.mxu0 0
        %846 = vmatprep.subr.bf16.mxu0 0
        %847 = vmatpush1.bf16.xpose.msra.mxu0 0
        %848 = vmatprep.subr.bf16.mxu0 0
        %849 = vmatpush1.bf16.xpose.msra.mxu0 0
        %850 = vmatprep.subr.bf16.mxu0 0
        %851 = vmatpush1.bf16.xpose.msra.mxu0 0
        %852 = vmatprep.subr.bf16.mxu0 0
        %853 = vmatpush1.bf16.xpose.msra.mxu0 0
        %854 = vmatprep.subr.bf16.mxu0 0
        %855 = vmatpush1.bf16.xpose.msra.mxu0 0
        %856 = vmatprep.subr.bf16.mxu0 0
        %857 = vmatpush1.bf16.xpose.msra.mxu0 0
        %858 = vmatprep.subr.bf16.mxu0 0
        %859 = vmatpush1.bf16.xpose.msra.mxu0 0
        %860 = vmatprep.subr.bf16.mxu0 0
        %861 = vmatpush1.bf16.xpose.msra.mxu0 0
        %862 = vmatprep.subr.bf16.mxu0 0
        %863 = vmatpush1.bf16.xpose.msra.mxu0 0
        %864 = vmatprep.subr.bf16.mxu0 0
        %865 = vmatpush1.bf16.xpose.msra.mxu0 0
        %866 = vmatprep.subr.bf16.mxu0 0
        %867 = vmatpush1.bf16.xpose.msra.mxu0 0
        %868 = vmatprep.subr.bf16.mxu0 0
        %869 = vmatpush1.bf16.xpose.msra.mxu0 0
        %870 = vmatprep.mubr.bf16.mxu0 0
        %871 = vmatmul.mubr.bf16.gmra.mrb[0].mxu0 %v833
        %v872 = vpop.f32.mrb[0].mxu0
        %v873 = vadd.f32 %v830, %v872
        %v874 = vpop.f32.mrb[0].mxu0
        %v875 = vpop.f32.mrb[0].mxu0
        %v876 = vpop.f32.mrb[0].mxu0
        %877 = vdwg.mxu0
        %v879 = vsel %vm831, %v818, 0
        %v882 = vsel %vm831, %v822, 0
        %884 = vmatprep.subr.bf16.mxu0 0
        %885 = vmatpush1.bf16.xpose.msra.mxu0 %v882
        %886 = vmatprep.subr.bf16.mxu0 0
        %887 = vmatpush1.bf16.xpose.msra.mxu0 0
        %888 = vmatprep.subr.bf16.mxu0 0
        %889 = vmatpush1.bf16.xpose.msra.mxu0 0
        %890 = vmatprep.subr.bf16.mxu0 0
        %891 = vmatpush1.bf16.xpose.msra.mxu0 0
        %892 = vmatprep.subr.bf16.mxu0 0
        %893 = vmatpush1.bf16.xpose.msra.mxu0 0
        %894 = vmatprep.subr.bf16.mxu0 0
        %895 = vmatpush1.bf16.xpose.msra.mxu0 0
        %896 = vmatprep.subr.bf16.mxu0 0
        %897 = vmatpush1.bf16.xpose.msra.mxu0 0
        %898 = vmatprep.subr.bf16.mxu0 0
        %899 = vmatpush1.bf16.xpose.msra.mxu0 0
        %900 = vmatprep.subr.bf16.mxu0 0
        %901 = vmatpush1.bf16.xpose.msra.mxu0 0
        %902 = vmatprep.subr.bf16.mxu0 0
        %903 = vmatpush1.bf16.xpose.msra.mxu0 0
        %904 = vmatprep.subr.bf16.mxu0 0
        %905 = vmatpush1.bf16.xpose.msra.mxu0 0
        %906 = vmatprep.subr.bf16.mxu0 0
        %907 = vmatpush1.bf16.xpose.msra.mxu0 0
        %908 = vmatprep.subr.bf16.mxu0 0
        %909 = vmatpush1.bf16.xpose.msra.mxu0 0
        %910 = vmatprep.subr.bf16.mxu0 0
        %911 = vmatpush1.bf16.xpose.msra.mxu0 0
        %912 = vmatprep.subr.bf16.mxu0 0
        %913 = vmatpush1.bf16.xpose.msra.mxu0 0
        %914 = vmatprep.subr.bf16.mxu0 0
        %915 = vmatpush1.bf16.xpose.msra.mxu0 0
        %916 = vmatprep.mubr.bf16.mxu0 0
        %917 = vmatmul.mubr.bf16.gmra.mrb[0].mxu0 %v879
        %v918 = vpop.f32.mrb[0].mxu0
        %v919 = vadd.f32 %v830, %v918
        %v920 = vpop.f32.mrb[0].mxu0
        %v921 = vpop.f32.mrb[0].mxu0
        %v922 = vpop.f32.mrb[0].mxu0
        %923 = vdwg.mxu0
        %v925 = vsel %vm831, %v819, 0
        %v928 = vsel %vm831, %v823, 0
        %930 = vmatprep.subr.bf16.mxu0 0
        %931 = vmatpush1.bf16.xpose.msra.mxu0 %v928
        %932 = vmatprep.subr.bf16.mxu0 0
        %933 = vmatpush1.bf16.xpose.msra.mxu0 0
        %934 = vmatprep.subr.bf16.mxu0 0
        %935 = vmatpush1.bf16.xpose.msra.mxu0 0
        %936 = vmatprep.subr.bf16.mxu0 0
        %937 = vmatpush1.bf16.xpose.msra.mxu0 0
        %938 = vmatprep.subr.bf16.mxu0 0
        %939 = vmatpush1.bf16.xpose.msra.mxu0 0
        %940 = vmatprep.subr.bf16.mxu0 0
        %941 = vmatpush1.bf16.xpose.msra.mxu0 0
        %942 = vmatprep.subr.bf16.mxu0 0
        %943 = vmatpush1.bf16.xpose.msra.mxu0 0
        %944 = vmatprep.subr.bf16.mxu0 0
        %945 = vmatpush1.bf16.xpose.msra.mxu0 0
        %946 = vmatprep.subr.bf16.mxu0 0
        %947 = vmatpush1.bf16.xpose.msra.mxu0 0
        %948 = vmatprep.subr.bf16.mxu0 0
        %949 = vmatpush1.bf16.xpose.msra.mxu0 0
        %950 = vmatprep.subr.bf16.mxu0 0
        %951 = vmatpush1.bf16.xpose.msra.mxu0 0
        %952 = vmatprep.subr.bf16.mxu0 0
        %953 = vmatpush1.bf16.xpose.msra.mxu0 0
        %954 = vmatprep.subr.bf16.mxu0 0
        %955 = vmatpush1.bf16.xpose.msra.mxu0 0
        %956 = vmatprep.subr.bf16.mxu0 0
        %957 = vmatpush1.bf16.xpose.msra.mxu0 0
        %958 = vmatprep.subr.bf16.mxu0 0
        %959 = vmatpush1.bf16.xpose.msra.mxu0 0
        %960 = vmatprep.subr.bf16.mxu0 0
        %961 = vmatpush1.bf16.xpose.msra.mxu0 0
        %962 = vmatprep.mubr.bf16.mxu0 0
        %963 = vmatmul.mubr.bf16.gmra.mrb[0].mxu0 %v925
        %v964 = vpop.f32.mrb[0].mxu0
        %v965 = vadd.f32 %v830, %v964
        %v966 = vpop.f32.mrb[0].mxu0
        %v967 = vpop.f32.mrb[0].mxu0
        %v968 = vpop.f32.mrb[0].mxu0
        %969 = vdwg.mxu0
        %v971 = vsel %vm831, %v820, 0
        %v974 = vsel %vm831, %v824, 0
        %976 = vmatprep.subr.bf16.mxu0 0
        %977 = vmatpush1.bf16.xpose.msra.mxu0 %v974
        %978 = vmatprep.subr.bf16.mxu0 0
        %979 = vmatpush1.bf16.xpose.msra.mxu0 0
        %980 = vmatprep.subr.bf16.mxu0 0
        %981 = vmatpush1.bf16.xpose.msra.mxu0 0
        %982 = vmatprep.subr.bf16.mxu0 0
        %983 = vmatpush1.bf16.xpose.msra.mxu0 0
        %984 = vmatprep.subr.bf16.mxu0 0
        %985 = vmatpush1.bf16.xpose.msra.mxu0 0
        %986 = vmatprep.subr.bf16.mxu0 0
        %987 = vmatpush1.bf16.xpose.msra.mxu0 0
        %988 = vmatprep.subr.bf16.mxu0 0
        %989 = vmatpush1.bf16.xpose.msra.mxu0 0
        %990 = vmatprep.subr.bf16.mxu0 0
        %991 = vmatpush1.bf16.xpose.msra.mxu0 0
        %992 = vmatprep.subr.bf16.mxu0 0
        %993 = vmatpush1.bf16.xpose.msra.mxu0 0
        %994 = vmatprep.subr.bf16.mxu0 0
        %995 = vmatpush1.bf16.xpose.msra.mxu0 0
        %996 = vmatprep.subr.bf16.mxu0 0
        %997 = vmatpush1.bf16.xpose.msra.mxu0 0
        %998 = vmatprep.subr.bf16.mxu0 0
        %999 = vmatpush1.bf16.xpose.msra.mxu0 0
        %1000 = vmatprep.subr.bf16.mxu0 0
        %1001 = vmatpush1.bf16.xpose.msra.mxu0 0
        %1002 = vmatprep.subr.bf16.mxu0 0
        %1003 = vmatpush1.bf16.xpose.msra.mxu0 0
        %1004 = vmatprep.subr.bf16.mxu0 0
        %1005 = vmatpush1.bf16.xpose.msra.mxu0 0
        %1006 = vmatprep.subr.bf16.mxu0 0
        %1007 = vmatpush1.bf16.xpose.msra.mxu0 0
        %1008 = vmatprep.mubr.bf16.mxu0 0
        %1009 = vmatmul.mubr.bf16.gmra.mrb[0].mxu0 %v971
        %v1010 = vpop.f32.mrb[0].mxu0
        %v1011 = vadd.f32 %v830, %v1010
        %v1012 = vpop.f32.mrb[0].mxu0
        %v1013 = vpop.f32.mrb[0].mxu0
        %v1014 = vpop.f32.mrb[0].mxu0
        %1015 = vdwg.mxu0
        %v1016 = vsel %vm831, %v873, -inf
        %1017 = vmax.xlane.f32.xlu0 %v1016
        %v1018 = vpop.xlane.xlu0 %1017
        %v1019 = vsel %vm831, %v919, -inf
        %1020 = vmax.xlane.f32.xlu0 %v1019
        %v1021 = vpop.xlane.xlu0 %1020
        %v1022 = vsel %vm831, %v965, -inf
        %1023 = vmax.xlane.f32.xlu0 %v1022
        %v1024 = vpop.xlane.xlu0 %1023
        %v1025 = vsel %vm831, %v1011, -inf
        %1026 = vmax.xlane.f32.xlu0 %v1025
        %v1027 = vpop.xlane.xlu0 %1026
        %v1028 = vsub.f32 %v873, %v1018
        %v1029 = vsub.f32 %v919, %v1021
        %v1030 = vsub.f32 %v965, %v1024
        %v1031 = vsub.f32 %v1011, %v1027
        %v1032 = vmul.f32 %v1028, 1.442695
        %v1033 = vpow.pop %v1032
        %v1034 = vmul.f32 %v1029, 1.442695
        %v1035 = vpow.pop %v1034
        %v1036 = vmul.f32 %v1030, 1.442695
        %v1037 = vpow.pop %v1036
        %v1038 = vmul.f32 %v1031, 1.442695
        %v1039 = vpow.pop %v1038
        %v1040 = vsel %vm831, %v1033, 0.0
        %1041 = vadd.xlane.f32.xlu0 %v1040
        %v1042 = vpop.xlane.xlu0 %1041
        %v1043 = vsel %vm831, %v1035, 0.0
        %1044 = vadd.xlane.f32.xlu0 %v1043
        %v1045 = vpop.xlane.xlu0 %1044
        %v1046 = vsel %vm831, %v1037, 0.0
        %1047 = vadd.xlane.f32.xlu0 %v1046
        %v1048 = vpop.xlane.xlu0 %1047
        %v1049 = vsel %vm831, %v1039, 0.0
        %1050 = vadd.xlane.f32.xlu0 %v1049
        %v1051 = vpop.xlane.xlu0 %1050
        %v1052 = vrcp.pop %v1042
        %v1053 = vmul.f32 %v1033, %v1052
        %v1054 = vrcp.pop %v1045
        %v1055 = vmul.f32 %v1035, %v1054
        %v1056 = vrcp.pop %v1048
        %v1057 = vmul.f32 %v1037, %v1056
        %v1058 = vrcp.pop %v1051
        %v1059 = vmul.f32 %v1039, %v1058
        %v1060 = vpack.c.bf16 %v1053, %v1053
        %v1061 = vpack.c.bf16 %v1055, %v1055
        %v1062 = vpack.c.bf16 %v1057, %v1057
        %v1063 = vpack.c.bf16 %v1059, %v1059
        %v1065 = vsel %vm831, %v1060, 0
        %vm1067 = vcmask 1043456
        %v1069 = vsel %vm1067, %v825, 0
        %1071 = vmatprep.subr.bf16.mxu0 0
        %1072 = vmatpush1.bf16.msra.mxu0 %v1069
        %1073 = vmatprep.subr.bf16.mxu0 0
        %1074 = vmatpush1.bf16.msra.mxu0 0
        %1075 = vmatprep.subr.bf16.mxu0 0
        %1076 = vmatpush1.bf16.msra.mxu0 0
        %1077 = vmatprep.subr.bf16.mxu0 0
        %1078 = vmatpush1.bf16.msra.mxu0 0
        %1079 = vmatprep.subr.bf16.mxu0 0
        %1080 = vmatpush1.bf16.msra.mxu0 0
        %1081 = vmatprep.subr.bf16.mxu0 0
        %1082 = vmatpush1.bf16.msra.mxu0 0
        %1083 = vmatprep.subr.bf16.mxu0 0
        %1084 = vmatpush1.bf16.msra.mxu0 0
        %1085 = vmatprep.subr.bf16.mxu0 0
        %1086 = vmatpush1.bf16.msra.mxu0 0
        %1087 = vmatprep.subr.bf16.mxu0 0
        %1088 = vmatpush1.bf16.msra.mxu0 0
        %1089 = vmatprep.subr.bf16.mxu0 0
        %1090 = vmatpush1.bf16.msra.mxu0 0
        %1091 = vmatprep.subr.bf16.mxu0 0
        %1092 = vmatpush1.bf16.msra.mxu0 0
        %1093 = vmatprep.subr.bf16.mxu0 0
        %1094 = vmatpush1.bf16.msra.mxu0 0
        %1095 = vmatprep.subr.bf16.mxu0 0
        %1096 = vmatpush1.bf16.msra.mxu0 0
        %1097 = vmatprep.subr.bf16.mxu0 0
        %1098 = vmatpush1.bf16.msra.mxu0 0
        %1099 = vmatprep.subr.bf16.mxu0 0
        %1100 = vmatpush1.bf16.msra.mxu0 0
        %1101 = vmatprep.subr.bf16.mxu0 0
        %1102 = vmatpush1.bf16.msra.mxu0 0
        %1103 = vmatprep.mubr.bf16.mxu0 0
        %1104 = vmatmul.mubr.bf16.gmra.mrb[0].mxu0 %v1065
        %v1105 = vpop.f32.mrb[0].mxu0
        %v1106 = vadd.f32 0.0, %v1105
        %v1107 = vpop.f32.mrb[0].mxu0
        %v1108 = vpop.f32.mrb[0].mxu0
        %v1109 = vpop.f32.mrb[0].mxu0
        %1110 = vdwg.mxu0
        %v1112 = vsel %vm831, %v1061, 0
        %v1115 = vsel %vm1067, %v826, 0
        %1117 = vmatprep.subr.bf16.mxu0 0
        %1118 = vmatpush1.bf16.msra.mxu0 %v1115
        %1119 = vmatprep.subr.bf16.mxu0 0
        %1120 = vmatpush1.bf16.msra.mxu0 0
        %1121 = vmatprep.subr.bf16.mxu0 0
        %1122 = vmatpush1.bf16.msra.mxu0 0
        %1123 = vmatprep.subr.bf16.mxu0 0
        %1124 = vmatpush1.bf16.msra.mxu0 0
        %1125 = vmatprep.subr.bf16.mxu0 0
        %1126 = vmatpush1.bf16.msra.mxu0 0
        %1127 = vmatprep.subr.bf16.mxu0 0
        %1128 = vmatpush1.bf16.msra.mxu0 0
        %1129 = vmatprep.subr.bf16.mxu0 0
        %1130 = vmatpush1.bf16.msra.mxu0 0
        %1131 = vmatprep.subr.bf16.mxu0 0
        %1132 = vmatpush1.bf16.msra.mxu0 0
        %1133 = vmatprep.subr.bf16.mxu0 0
        %1134 = vmatpush1.bf16.msra.mxu0 0
        %1135 = vmatprep.subr.bf16.mxu0 0
        %1136 = vmatpush1.bf16.msra.mxu0 0
        %1137 = vmatprep.subr.bf16.mxu0 0
        %1138 = vmatpush1.bf16.msra.mxu0 0
        %1139 = vmatprep.subr.bf16.mxu0 0
        %1140 = vmatpush1.bf16.msra.mxu0 0
        %1141 = vmatprep.subr.bf16.mxu0 0
        %1142 = vmatpush1.bf16.msra.mxu0 0
        %1143 = vmatprep.subr.bf16.mxu0 0
        %1144 = vmatpush1.bf16.msra.mxu0 0
        %1145 = vmatprep.subr.bf16.mxu0 0
        %1146 = vmatpush1.bf16.msra.mxu0 0
        %1147 = vmatprep.subr.bf16.mxu0 0
        %1148 = vmatpush1.bf16.msra.mxu0 0
        %1149 = vmatprep.mubr.bf16.mxu0 0
        %1150 = vmatmul.mubr.bf16.gmra.mrb[0].mxu0 %v1112
        %v1151 = vpop.f32.mrb[0].mxu0
        %v1152 = vadd.f32 0.0, %v1151
        %v1153 = vpop.f32.mrb[0].mxu0
        %v1154 = vpop.f32.mrb[0].mxu0
        %v1155 = vpop.f32.mrb[0].mxu0
        %1156 = vdwg.mxu0
        %v1158 = vsel %vm831, %v1062, 0
        %v1161 = vsel %vm1067, %v827, 0
        %1163 = vmatprep.subr.bf16.mxu0 0
        %1164 = vmatpush1.bf16.msra.mxu0 %v1161
        %1165 = vmatprep.subr.bf16.mxu0 0
        %1166 = vmatpush1.bf16.msra.mxu0 0
        %1167 = vmatprep.subr.bf16.mxu0 0
        %1168 = vmatpush1.bf16.msra.mxu0 0
        %1169 = vmatprep.subr.bf16.mxu0 0
        %1170 = vmatpush1.bf16.msra.mxu0 0
        %1171 = vmatprep.subr.bf16.mxu0 0
        %1172 = vmatpush1.bf16.msra.mxu0 0
        %1173 = vmatprep.subr.bf16.mxu0 0
        %1174 = vmatpush1.bf16.msra.mxu0 0
        %1175 = vmatprep.subr.bf16.mxu0 0
        %1176 = vmatpush1.bf16.msra.mxu0 0
        %1177 = vmatprep.subr.bf16.mxu0 0
        %1178 = vmatpush1.bf16.msra.mxu0 0
        %1179 = vmatprep.subr.bf16.mxu0 0
        %1180 = vmatpush1.bf16.msra.mxu0 0
        %1181 = vmatprep.subr.bf16.mxu0 0
        %1182 = vmatpush1.bf16.msra.mxu0 0
        %1183 = vmatprep.subr.bf16.mxu0 0
        %1184 = vmatpush1.bf16.msra.mxu0 0
        %1185 = vmatprep.subr.bf16.mxu0 0
        %1186 = vmatpush1.bf16.msra.mxu0 0
        %1187 = vmatprep.subr.bf16.mxu0 0
        %1188 = vmatpush1.bf16.msra.mxu0 0
        %1189 = vmatprep.subr.bf16.mxu0 0
        %1190 = vmatpush1.bf16.msra.mxu0 0
        %1191 = vmatprep.subr.bf16.mxu0 0
        %1192 = vmatpush1.bf16.msra.mxu0 0
        %1193 = vmatprep.subr.bf16.mxu0 0
        %1194 = vmatpush1.bf16.msra.mxu0 0
        %1195 = vmatprep.mubr.bf16.mxu0 0
        %1196 = vmatmul.mubr.bf16.gmra.mrb[0].mxu0 %v1158
        %v1197 = vpop.f32.mrb[0].mxu0
        %v1198 = vadd.f32 0.0, %v1197
        %v1199 = vpop.f32.mrb[0].mxu0
        %v1200 = vpop.f32.mrb[0].mxu0
        %v1201 = vpop.f32.mrb[0].mxu0
        %1202 = vdwg.mxu0
        %v1204 = vsel %vm831, %v1063, 0
        %v1207 = vsel %vm1067, %v828, 0
        %1209 = vmatprep.subr.bf16.mxu0 0
        %1210 = vmatpush1.bf16.msra.mxu0 %v1207
        %1211 = vmatprep.subr.bf16.mxu0 0
        %1212 = vmatpush1.bf16.msra.mxu0 0
        %1213 = vmatprep.subr.bf16.mxu0 0
        %1214 = vmatpush1.bf16.msra.mxu0 0
        %1215 = vmatprep.subr.bf16.mxu0 0
        %1216 = vmatpush1.bf16.msra.mxu0 0
        %1217 = vmatprep.subr.bf16.mxu0 0
        %1218 = vmatpush1.bf16.msra.mxu0 0
        %1219 = vmatprep.subr.bf16.mxu0 0
        %1220 = vmatpush1.bf16.msra.mxu0 0
        %1221 = vmatprep.subr.bf16.mxu0 0
        %1222 = vmatpush1.bf16.msra.mxu0 0
        %1223 = vmatprep.subr.bf16.mxu0 0
        %1224 = vmatpush1.bf16.msra.mxu0 0
        %1225 = vmatprep.subr.bf16.mxu0 0
        %1226 = vmatpush1.bf16.msra.mxu0 0
        %1227 = vmatprep.subr.bf16.mxu0 0
        %1228 = vmatpush1.bf16.msra.mxu0 0
        %1229 = vmatprep.subr.bf16.mxu0 0
        %1230 = vmatpush1.bf16.msra.mxu0 0
        %1231 = vmatprep.subr.bf16.mxu0 0
        %1232 = vmatpush1.bf16.msra.mxu0 0
        %1233 = vmatprep.subr.bf16.mxu0 0
        %1234 = vmatpush1.bf16.msra.mxu0 0
        %1235 = vmatprep.subr.bf16.mxu0 0
        %1236 = vmatpush1.bf16.msra.mxu0 0
        %1237 = vmatprep.subr.bf16.mxu0 0
        %1238 = vmatpush1.bf16.msra.mxu0 0
        %1239 = vmatprep.subr.bf16.mxu0 0
        %1240 = vmatpush1.bf16.msra.mxu0 0
        %1241 = vmatprep.mubr.bf16.mxu0 0
        %1242 = vmatmul.mubr.bf16.gmra.mrb[0].mxu0 %v1204
        %v1243 = vpop.f32.mrb[0].mxu0
        %v1244 = vadd.f32 0.0, %v1243
        %v1245 = vpop.f32.mrb[0].mxu0
        %v1246 = vpop.f32.mrb[0].mxu0
        %v1247 = vpop.f32.mrb[0].mxu0
        %1248 = vdwg.mxu0
        %v1249 = vpack.c.bf16 %v1106, %v1106
        %v1250 = vpack.c.bf16 %v1152, %v1152
        %v1251 = vpack.c.bf16 %v1198, %v1198
        %v1252 = vpack.c.bf16 %v1244, %v1244
        %v1253 = vld [vmem:[#allocation11] sm:$0xf]
        %v1254 = vld [vmem:[#allocation11 + $0x4] sm:$0xf]
        %v1255 = vld [vmem:[#allocation11 + $0x8] sm:$0xf]
        %v1256 = vld [vmem:[#allocation11 + $0xc] sm:$0xf]
        %v1258 = vsel %vm831, %v1249, 0
        %v1261 = vsel %vm1067, %v1253, 0
        %1263 = vmatprep.subr.bf16.mxu0 0
        %1264 = vmatpush1.bf16.msra.mxu0 %v1261
        %1265 = vmatprep.subr.bf16.mxu0 0
        %1266 = vmatpush1.bf16.msra.mxu0 0
        %1267 = vmatprep.subr.bf16.mxu0 0
        %1268 = vmatpush1.bf16.msra.mxu0 0
        %1269 = vmatprep.subr.bf16.mxu0 0
        %1270 = vmatpush1.bf16.msra.mxu0 0
        %1271 = vmatprep.subr.bf16.mxu0 0
        %1272 = vmatpush1.bf16.msra.mxu0 0
        %1273 = vmatprep.subr.bf16.mxu0 0
        %1274 = vmatpush1.bf16.msra.mxu0 0
        %1275 = vmatprep.subr.bf16.mxu0 0
        %1276 = vmatpush1.bf16.msra.mxu0 0
        %1277 = vmatprep.subr.bf16.mxu0 0
        %1278 = vmatpush1.bf16.msra.mxu0 0
        %1279 = vmatprep.subr.bf16.mxu0 0
        %1280 = vmatpush1.bf16.msra.mxu0 0
        %1281 = vmatprep.subr.bf16.mxu0 0
        %1282 = vmatpush1.bf16.msra.mxu0 0
        %1283 = vmatprep.subr.bf16.mxu0 0
        %1284 = vmatpush1.bf16.msra.mxu0 0
        %1285 = vmatprep.subr.bf16.mxu0 0
        %1286 = vmatpush1.bf16.msra.mxu0 0
        %1287 = vmatprep.subr.bf16.mxu0 0
        %1288 = vmatpush1.bf16.msra.mxu0 0
        %1289 = vmatprep.subr.bf16.mxu0 0
        %1290 = vmatpush1.bf16.msra.mxu0 0
        %1291 = vmatprep.subr.bf16.mxu0 0
        %1292 = vmatpush1.bf16.msra.mxu0 0
        %1293 = vmatprep.subr.bf16.mxu0 0
        %1294 = vmatpush1.bf16.msra.mxu0 0
        %1295 = vmatprep.mubr.bf16.mxu0 0
        %1296 = vmatmul.mubr.bf16.gmra.mrb[0].mxu0 %v1258
        %v1297 = vpop.f32.mrb[0].mxu0
        %v1298 = vadd.f32 0.0, %v1297
        %v1299 = vpop.f32.mrb[0].mxu0
        %v1300 = vpop.f32.mrb[0].mxu0
        %v1301 = vpop.f32.mrb[0].mxu0
        %1302 = vdwg.mxu0
        %v1304 = vsel %vm831, %v1250, 0
        %v1307 = vsel %vm1067, %v1254, 0
        %1309 = vmatprep.subr.bf16.mxu0 0
        %1310 = vmatpush1.bf16.msra.mxu0 %v1307
        %1311 = vmatprep.subr.bf16.mxu0 0
        %1312 = vmatpush1.bf16.msra.mxu0 0
        %1313 = vmatprep.subr.bf16.mxu0 0
        %1314 = vmatpush1.bf16.msra.mxu0 0
        %1315 = vmatprep.subr.bf16.mxu0 0
        %1316 = vmatpush1.bf16.msra.mxu0 0
        %1317 = vmatprep.subr.bf16.mxu0 0
        %1318 = vmatpush1.bf16.msra.mxu0 0
        %1319 = vmatprep.subr.bf16.mxu0 0
        %1320 = vmatpush1.bf16.msra.mxu0 0
        %1321 = vmatprep.subr.bf16.mxu0 0
        %1322 = vmatpush1.bf16.msra.mxu0 0
        %1323 = vmatprep.subr.bf16.mxu0 0
        %1324 = vmatpush1.bf16.msra.mxu0 0
        %1325 = vmatprep.subr.bf16.mxu0 0
        %1326 = vmatpush1.bf16.msra.mxu0 0
        %1327 = vmatprep.subr.bf16.mxu0 0
        %1328 = vmatpush1.bf16.msra.mxu0 0
        %1329 = vmatprep.subr.bf16.mxu0 0
        %1330 = vmatpush1.bf16.msra.mxu0 0
        %1331 = vmatprep.subr.bf16.mxu0 0
        %1332 = vmatpush1.bf16.msra.mxu0 0
        %1333 = vmatprep.subr.bf16.mxu0 0
        %1334 = vmatpush1.bf16.msra.mxu0 0
        %1335 = vmatprep.subr.bf16.mxu0 0
        %1336 = vmatpush1.bf16.msra.mxu0 0
        %1337 = vmatprep.subr.bf16.mxu0 0
        %1338 = vmatpush1.bf16.msra.mxu0 0
        %1339 = vmatprep.subr.bf16.mxu0 0
        %1340 = vmatpush1.bf16.msra.mxu0 0
        %1341 = vmatprep.mubr.bf16.mxu0 0
        %1342 = vmatmul.mubr.bf16.gmra.mrb[0].mxu0 %v1304
        %v1343 = vpop.f32.mrb[0].mxu0
        %v1344 = vadd.f32 0.0, %v1343
        %v1345 = vpop.f32.mrb[0].mxu0
        %v1346 = vpop.f32.mrb[0].mxu0
        %v1347 = vpop.f32.mrb[0].mxu0
        %1348 = vdwg.mxu0
        %v1350 = vsel %vm831, %v1251, 0
        %v1353 = vsel %vm1067, %v1255, 0
        %1355 = vmatprep.subr.bf16.mxu0 0
        %1356 = vmatpush1.bf16.msra.mxu0 %v1353
        %1357 = vmatprep.subr.bf16.mxu0 0
        %1358 = vmatpush1.bf16.msra.mxu0 0
        %1359 = vmatprep.subr.bf16.mxu0 0
        %1360 = vmatpush1.bf16.msra.mxu0 0
        %1361 = vmatprep.subr.bf16.mxu0 0
        %1362 = vmatpush1.bf16.msra.mxu0 0
        %1363 = vmatprep.subr.bf16.mxu0 0
        %1364 = vmatpush1.bf16.msra.mxu0 0
        %1365 = vmatprep.subr.bf16.mxu0 0
        %1366 = vmatpush1.bf16.msra.mxu0 0
        %1367 = vmatprep.subr.bf16.mxu0 0
        %1368 = vmatpush1.bf16.msra.mxu0 0
        %1369 = vmatprep.subr.bf16.mxu0 0
        %1370 = vmatpush1.bf16.msra.mxu0 0
        %1371 = vmatprep.subr.bf16.mxu0 0
        %1372 = vmatpush1.bf16.msra.mxu0 0
        %1373 = vmatprep.subr.bf16.mxu0 0
        %1374 = vmatpush1.bf16.msra.mxu0 0
        %1375 = vmatprep.subr.bf16.mxu0 0
        %1376 = vmatpush1.bf16.msra.mxu0 0
        %1377 = vmatprep.subr.bf16.mxu0 0
        %1378 = vmatpush1.bf16.msra.mxu0 0
        %1379 = vmatprep.subr.bf16.mxu0 0
        %1380 = vmatpush1.bf16.msra.mxu0 0
        %1381 = vmatprep.subr.bf16.mxu0 0
        %1382 = vmatpush1.bf16.msra.mxu0 0
        %1383 = vmatprep.subr.bf16.mxu0 0
        %1384 = vmatpush1.bf16.msra.mxu0 0
        %1385 = vmatprep.subr.bf16.mxu0 0
        %1386 = vmatpush1.bf16.msra.mxu0 0
        %1387 = vmatprep.mubr.bf16.mxu0 0
        %1388 = vmatmul.mubr.bf16.gmra.mrb[0].mxu0 %v1350
        %v1389 = vpop.f32.mrb[0].mxu0
        %v1390 = vadd.f32 0.0, %v1389
        %v1391 = vpop.f32.mrb[0].mxu0
        %v1392 = vpop.f32.mrb[0].mxu0
        %v1393 = vpop.f32.mrb[0].mxu0
        %1394 = vdwg.mxu0
        %v1396 = vsel %vm831, %v1252, 0
        %v1399 = vsel %vm1067, %v1256, 0
        %1401 = vmatprep.subr.bf16.mxu0 0
        %1402 = vmatpush1.bf16.msra.mxu0 %v1399
        %1403 = vmatprep.subr.bf16.mxu0 0
        %1404 = vmatpush1.bf16.msra.mxu0 0
        %1405 = vmatprep.subr.bf16.mxu0 0
        %1406 = vmatpush1.bf16.msra.mxu0 0
        %1407 = vmatprep.subr.bf16.mxu0 0
        %1408 = vmatpush1.bf16.msra.mxu0 0
        %1409 = vmatprep.subr.bf16.mxu0 0
        %1410 = vmatpush1.bf16.msra.mxu0 0
        %1411 = vmatprep.subr.bf16.mxu0 0
        %1412 = vmatpush1.bf16.msra.mxu0 0
        %1413 = vmatprep.subr.bf16.mxu0 0
        %1414 = vmatpush1.bf16.msra.mxu0 0
        %1415 = vmatprep.subr.bf16.mxu0 0
        %1416 = vmatpush1.bf16.msra.mxu0 0
        %1417 = vmatprep.subr.bf16.mxu0 0
        %1418 = vmatpush1.bf16.msra.mxu0 0
        %1419 = vmatprep.subr.bf16.mxu0 0
        %1420 = vmatpush1.bf16.msra.mxu0 0
        %1421 = vmatprep.subr.bf16.mxu0 0
        %1422 = vmatpush1.bf16.msra.mxu0 0
        %1423 = vmatprep.subr.bf16.mxu0 0
        %1424 = vmatpush1.bf16.msra.mxu0 0
        %1425 = vmatprep.subr.bf16.mxu0 0
        %1426 = vmatpush1.bf16.msra.mxu0 0
        %1427 = vmatprep.subr.bf16.mxu0 0
        %1428 = vmatpush1.bf16.msra.mxu0 0
        %1429 = vmatprep.subr.bf16.mxu0 0
        %1430 = vmatpush1.bf16.msra.mxu0 0
        %1431 = vmatprep.subr.bf16.mxu0 0
        %1432 = vmatpush1.bf16.msra.mxu0 0
        %1433 = vmatprep.mubr.bf16.mxu0 0
        %1434 = vmatmul.mubr.bf16.gmra.mrb[0].mxu0 %v1396
        %v1435 = vpop.f32.mrb[0].mxu0
        %v1436 = vadd.f32 0.0, %v1435
        %v1437 = vpop.f32.mrb[0].mxu0
        %v1438 = vpop.f32.mrb[0].mxu0
        %v1439 = vpop.f32.mrb[0].mxu0
        %1440 = vdwg.mxu0
        %vm1441 = vcmask 261120
        %v1442 = vsel %vm1441, %v1298, 0.0
        %v1443 = vsel %vm1441, %v1344, 0.0
        %v1444 = vadd.f32 %v1442, %v1443
        %v1445 = vsel %vm1441, %v1390, 0.0
        %v1446 = vadd.f32 %v1444, %v1445
        %v1447 = vsel %vm1441, %v1436, 0.0
        %v1448 = vadd.f32 %v1446, %v1447
        %v1449 = vld [vmem:[#allocation13] sm:$0x1]
        %v1451 = vlaneseq
        %v1452 = vshrl.u32 %v1451, 7
        %v1453 = vsub.s32 0, %v1452
        %v1454 = vrot.slane %v1449, %v1453
        %v1456 = vadd.f32 %v1448, %v1454
        %v1457 = vadd.f32 %v816, %v1456
        %v1458 = vld [vmem:[#allocation14] sm:$0x1]
        %v1459 = vld [vmem:[#allocation16] sm:$0x1]
        %v1460 = vsel %vm1441, %v1457, 0.0
        %1461 = vadd.xlane.f32.xlu0 %v1460
        %v1462 = vpop.xlane.xlu0 %1461
        %v1463 = vrcp.pop 32.0
        %v1464 = vmul.f32 %v1462, %v1463
        %v1465 = vsub.f32 %v1457, %v1464
        %v1466 = vmul.f32 %v1465, %v1465
        %v1467 = vsel %vm1441, %v1466, 0.0
        %1468 = vadd.xlane.f32.xlu0 %v1467
        %v1469 = vpop.xlane.xlu0 %1468
        %v1470 = vmul.f32 %v1469, %v1463
        %v1471 = vadd.f32 %v1470, 1e-05
        %v1472 = vrsqrt.pop %v1471
        %v1473 = vmul.f32 %v1465, %v1472
        %v1475 = vlaneseq
        %v1476 = vshrl.u32 %v1475, 7
        %v1477 = vsub.s32 0, %v1476
        %v1478 = vrot.slane %v1458, %v1477
        %v1480 = vmul.f32 %v1473, %v1478
        %v1482 = vlaneseq
        %v1483 = vshrl.u32 %v1482, 7
        %v1484 = vsub.s32 0, %v1483
        %v1485 = vrot.slane %v1459, %v1484
        %v1487 = vadd.f32 %v1480, %v1485
        %v1488 = vpack.c.bf16 %v1487, %v1487
        %v1489 = vld [vmem:[#allocation20] sm:$0xf]
        %v1490 = vld [vmem:[#allocation20 + $0x4] sm:$0xf]
        %v1491 = vld [vmem:[#allocation20 + $0x8] sm:$0xf]
        %v1492 = vld [vmem:[#allocation20 + $0xc] sm:$0xf]
        %v1493 = vld [vmem:[#allocation22] sm:$0x1]
        %v1495 = vlaneseq
        %v1496 = vshrl.u32 %v1495, 7
        %v1497 = vsub.s32 0, %v1496
        %v1498 = vrot.slane %v1493, %v1497
        %v1504 = vunpack.c.l.b16 %v1489
        %v1505 = vunpack.c.l.b16 %v1490
        %v1506 = vunpack.c.l.b16 %v1491
        %v1507 = vunpack.c.l.b16 %v1492
        %v1508 = vpack.c.b16 %v1505, %v1504
        %v1509 = vpack.c.b16 %v1507, %v1506
        %v1513 = vsel %vm1441, %v1488, 0
        %1515 = vmatprep.subr.bf16.mxu0 0
        %1516 = vmatpush1.bf16.msra.mxu0 %v1508
        %1517 = vmatprep.subr.bf16.mxu0 0
        %1518 = vmatpush1.bf16.msra.mxu0 %v1509
        %1519 = vmatprep.subr.bf16.mxu0 0
        %1520 = vmatpush1.bf16.msra.mxu0 0
        %1521 = vmatprep.subr.bf16.mxu0 0
        %1522 = vmatpush1.bf16.msra.mxu0 0
        %1523 = vmatprep.subr.bf16.mxu0 0
        %1524 = vmatpush1.bf16.msra.mxu0 0
        %1525 = vmatprep.subr.bf16.mxu0 0
        %1526 = vmatpush1.bf16.msra.mxu0 0
        %1527 = vmatprep.subr.bf16.mxu0 0
        %1528 = vmatpush1.bf16.msra.mxu0 0
        %1529 = vmatprep.subr.bf16.mxu0 0
        %1530 = vmatpush1.bf16.msra.mxu0 0
        %1531 = vmatprep.subr.bf16.mxu0 0
        %1532 = vmatpush1.bf16.msra.mxu0 0
        %1533 = vmatprep.subr.bf16.mxu0 0
        %1534 = vmatpush1.bf16.msra.mxu0 0
        %1535 = vmatprep.subr.bf16.mxu0 0
        %1536 = vmatpush1.bf16.msra.mxu0 0
        %1537 = vmatprep.subr.bf16.mxu0 0
        %1538 = vmatpush1.bf16.msra.mxu0 0
        %1539 = vmatprep.subr.bf16.mxu0 0
        %1540 = vmatpush1.bf16.msra.mxu0 0
        %1541 = vmatprep.subr.bf16.mxu0 0
        %1542 = vmatpush1.bf16.msra.mxu0 0
        %1543 = vmatprep.subr.bf16.mxu0 0
        %1544 = vmatpush1.bf16.msra.mxu0 0
        %1545 = vmatprep.subr.bf16.mxu0 0
        %1546 = vmatpush1.bf16.msra.mxu0 0
        %1547 = vmatprep.mubr.bf16.mxu0 0
        %1548 = vmatmul.mubr.bf16.gmra.mrb[0].mxu0 %v1513
        %v1549 = vpop.f32.mrb[0].mxu0
        %v1550 = vadd.f32 %v1498, %v1549
        %v1551 = vpop.f32.mrb[0].mxu0
        %v1552 = vpop.f32.mrb[0].mxu0
        %v1553 = vpop.f32.mrb[0].mxu0
        %1554 = vdwg.mxu0
        %v1555 = vmax.f32 %v1550, 0.0
        %v1556 = vpack.c.bf16 %v1555, %v1555
        %v1557 = vld [vmem:[#allocation23] sm:$0xf]
        %v1558 = vld [vmem:[#allocation23 + $0x4] sm:$0xf]
        %v1559 = vld [vmem:[#allocation23 + $0x8] sm:$0xf]
        %v1560 = vld [vmem:[#allocation23 + $0xc] sm:$0xf]
        %v1561 = vld [vmem:[#allocation23 + $0x10] sm:$0xf]
        %v1562 = vld [vmem:[#allocation23 + $0x14] sm:$0xf]
        %v1563 = vld [vmem:[#allocation23 + $0x18] sm:$0xf]
        %v1564 = vld [vmem:[#allocation23 + $0x1c] sm:$0xf]
        %v1565 = vld [vmem:[#allocation25] sm:$0x1]
        %v1567 = vlaneseq
        %v1568 = vshrl.u32 %v1567, 7
        %v1569 = vsub.s32 0, %v1568
        %v1570 = vrot.slane %v1565, %v1569
        %v1580 = vunpack.c.l.b16 %v1557
        %v1581 = vunpack.c.l.b16 %v1558
        %v1582 = vunpack.c.l.b16 %v1559
        %v1583 = vunpack.c.l.b16 %v1560
        %v1584 = vunpack.c.l.b16 %v1561
        %v1585 = vunpack.c.l.b16 %v1562
        %v1586 = vunpack.c.l.b16 %v1563
        %v1587 = vunpack.c.l.b16 %v1564
        %v1588 = vpack.c.b16 %v1581, %v1580
        %v1589 = vpack.c.b16 %v1583, %v1582
        %v1590 = vpack.c.b16 %v1585, %v1584
        %v1591 = vpack.c.b16 %v1587, %v1586
        %vm1596 = vcmask 523264
        %v1598 = vsel %vm1596, %v1556, 0
        %1600 = vmatprep.subr.bf16.mxu0 0
        %1601 = vmatpush1.bf16.msra.mxu0 %v1588
        %1602 = vmatprep.subr.bf16.mxu0 0
        %1603 = vmatpush1.bf16.msra.mxu0 %v1589
        %1604 = vmatprep.subr.bf16.mxu0 0
        %1605 = vmatpush1.bf16.msra.mxu0 %v1590
        %1606 = vmatprep.subr.bf16.mxu0 0
        %1607 = vmatpush1.bf16.msra.mxu0 %v1591
        %1608 = vmatprep.subr.bf16.mxu0 0
        %1609 = vmatpush1.bf16.msra.mxu0 0
        %1610 = vmatprep.subr.bf16.mxu0 0
        %1611 = vmatpush1.bf16.msra.mxu0 0
        %1612 = vmatprep.subr.bf16.mxu0 0
        %1613 = vmatpush1.bf16.msra.mxu0 0
        %1614 = vmatprep.subr.bf16.mxu0 0
        %1615 = vmatpush1.bf16.msra.mxu0 0
        %1616 = vmatprep.subr.bf16.mxu0 0
        %1617 = vmatpush1.bf16.msra.mxu0 0
        %1618 = vmatprep.subr.bf16.mxu0 0
        %1619 = vmatpush1.bf16.msra.mxu0 0
        %1620 = vmatprep.subr.bf16.mxu0 0
        %1621 = vmatpush1.bf16.msra.mxu0 0
        %1622 = vmatprep.subr.bf16.mxu0 0
        %1623 = vmatpush1.bf16.msra.mxu0 0
        %1624 = vmatprep.subr.bf16.mxu0 0
        %1625 = vmatpush1.bf16.msra.mxu0 0
        %1626 = vmatprep.subr.bf16.mxu0 0
        %1627 = vmatpush1.bf16.msra.mxu0 0
        %1628 = vmatprep.subr.bf16.mxu0 0
        %1629 = vmatpush1.bf16.msra.mxu0 0
        %1630 = vmatprep.subr.bf16.mxu0 0
        %1631 = vmatpush1.bf16.msra.mxu0 0
        %1632 = vmatprep.mubr.bf16.mxu0 0
        %1633 = vmatmul.mubr.bf16.gmra.mrb[0].mxu0 %v1598
        %v1634 = vpop.f32.mrb[0].mxu0
        %v1635 = vadd.f32 %v1570, %v1634
        %v1636 = vpop.f32.mrb[0].mxu0
        %v1637 = vpop.f32.mrb[0].mxu0
        %v1638 = vpop.f32.mrb[0].mxu0
        %1639 = vdwg.mxu0
        %v1640 = vadd.f32 %v1487, %v1635
        %v1641 = vld [vmem:[#allocation17] sm:$0x1]
        %v1642 = vld [vmem:[#allocation19] sm:$0x1]
        %v1643 = vsel %vm1441, %v1640, 0.0
        %1644 = vadd.xlane.f32.xlu0 %v1643
        %v1645 = vpop.xlane.xlu0 %1644
        %v1646 = vmul.f32 %v1645, %v1463
        %v1647 = vsub.f32 %v1640, %v1646
        %v1648 = vmul.f32 %v1647, %v1647
        %v1649 = vsel %vm1441, %v1648, 0.0
        %1650 = vadd.xlane.f32.xlu0 %v1649
        %v1651 = vpop.xlane.xlu0 %1650
        %v1652 = vmul.f32 %v1651, %v1463
        %v1653 = vadd.f32 %v1652, 1e-05
        %v1654 = vrsqrt.pop %v1653
        %v1655 = vmul.f32 %v1647, %v1654
        %v1657 = vlaneseq
        %v1658 = vshrl.u32 %v1657, 7
        %v1659 = vsub.s32 0, %v1658
        %v1660 = vrot.slane %v1641, %v1659
        %v1662 = vmul.f32 %v1655, %v1660
        %v1664 = vlaneseq
        %v1665 = vshrl.u32 %v1664, 7
        %v1666 = vsub.s32 0, %v1665
        %v1667 = vrot.slane %v1642, %v1666
        %v1669 = vadd.f32 %v1662, %v1667
        %1670 = vst.msk [vmem:[%s814] sm:$0xff] %vm1441, %v1669
        %s1671 = sand.u32 %s411, 1
        %s1672 = scalar_lea.sflag [#allocation4], %s1671
        %s1673 = sand.u32 %s411, 1
        %s1674 = smul.addr %s1673, 8
        %s1675 = scalar_lea.vmem [#allocation26], %s1674
        // Predicated region
        $region141: #{encoder_layer.3} parent=79 // pred_check
          %p1676 = pneg %p421
        $region142: #{encoder_layer.3} parent=79 // pred_check_branch
          %1678 = sbr.rel (%p1676) target = $region144
        $region143: #{encoder_layer.3} parent=79 // pred_region
          %s1680 = ssub.s32 128, 128
          %1681 = vsyncadd %s1672, %s1680
          %s1682 = sadd.s32 %s48, %s47
          %s1683 = smul.addr %s1682, 128
          %s1684 = scalar_lea.hbm %s15, %s1683
          %s1686 = sshll.u32 %s1675, 4
          %s1687 = int_to_ptr.vmem [resolvable:$true] %s1686
          %1689 = dma.vmem_to_hbm [thread:$0]  %s1687, 128, %s1684, %s1672
        $region144: #{encoder_layer.3} parent=79 // pred_fallthru
          _
      $region80: #{encoder_layer.3} parent=5 // pred_fallthru
        _
      %p1690 = scmp.le.s32.totalorder 2, %s38
      // Predicated region
      $region145: #{encoder_layer.3} parent=5 // pred_check
        %p1691 = pneg %p1690
      $region146: #{encoder_layer.3} parent=5 // pred_check_branch
        %1693 = sbr.rel (%p1691) target = $region148
      $region147: #{encoder_layer.3} parent=5 // pred_region
        %s1694 = ssub.s32 %s38, 2
        // Predicated region
        $region149: #{encoder_layer.3} parent=147 // pred_check
          %p1695 = pneg %p427
        $region150: #{encoder_layer.3} parent=147 // pred_check_branch
          %1697 = sbr.rel (%p1695) target = $region152
        $region151: #{encoder_layer.3} parent=147 // pred_region
          %s1698 = sand.u32 %s412, 1
          %s1699 = scalar_lea.sflag [#allocation4], %s1698
          %s1700 = sand.u32 %s412, 1
          %s1701 = smul.addr %s1700, 8
          %s1702 = scalar_lea.vmem [#allocation26], %s1701
          %1703 = dma.done %s1699, 128
        $region152: #{encoder_layer.3} parent=147 // pred_fallthru
          _
      $region148: #{encoder_layer.3} parent=5 // pred_fallthru
        _
    $region6: #{encoder_layer.3} parent=1 // loop_footer
      %s42 = sadd.s32 1, %s38
    $region7: #{encoder_layer.3} parent=1 // loop_footer_branch
      %37 = sbr.rel target = $region3
    $region8: #{encoder_layer.3} parent=1 // loop_exit
      _
    %1704 = vsyncpa [#allocation3], 1
    %s1705 = scalar_lea.sflag [#allocation3], 1
    %1706 = vsyncpa %s1705, 1
    %1707 = vsyncpa [#allocation6], 1
    %s1708 = scalar_lea.sflag [#allocation6], 1
    %1709 = vsyncpa %s1708, 1
    %1710 = vsyncpa [#allocation9], 1
    %s1711 = scalar_lea.sflag [#allocation9], 1
    %1712 = vsyncpa %s1711, 1
    %1713 = vsyncpa [#allocation12], 1
    %1714 = vsyncpa [#allocation15], 1
    %1715 = vsyncpa [#allocation18], 1
    %1716 = vsyncpa [#allocation21], 1
    %1717 = vsyncpa [#allocation24], 1
    %1718 = vsyncpa [#allocation4], 1
    %s1719 = scalar_lea.sflag [#allocation4], 1
    %1720 = vsyncpa %s1719, 1

</llo_original>
